<compile_context>
chip_gen: v5e
topology: v5e:2x2
jax: 0.10.0
libtpu: 0.0.40
codegen_flags: <defaults>
</compile_context>

<pallas_src>
import functools

import jax
import jax.numpy as jnp
from jax.experimental import pallas as pl
from jax.experimental.pallas import tpu as pltpu

LANE = 128


def _round_up(n, m):
    return ((n + m - 1) // m) * m


def _pad2(a, rows, cols, dtype=None):
    a = jnp.pad(a, ((0, rows - a.shape[0]), (0, cols - a.shape[1])))
    return a if dtype is None else a.astype(dtype)


# --------------------------------------------------------------------------
# Kernel 1: h = Linear(F->H) -> ReLU -> Linear(H->H), tiled over node rows.
# --------------------------------------------------------------------------
def f1_kernel(x_ref, w1_ref, b1_ref, w2_ref, b2_ref, h_ref):
    h = jnp.dot(x_ref[...], w1_ref[...],
                preferred_element_type=jnp.float32) + b1_ref[...]
    h = jnp.maximum(h, 0.0)
    h = jnp.dot(h.astype(jnp.bfloat16), w2_ref[...],
                preferred_element_type=jnp.float32) + b2_ref[...]
    h_ref[...] = h.astype(h_ref.dtype)


# --------------------------------------------------------------------------
# Kernel 2: y = f2(adj @ h), tiled over (output row tiles, K tiles).
# K reduction is the last grid axis; f32 accumulator in VMEM scratch.
# --------------------------------------------------------------------------
def agg_f2_kernel(adj_ref, h_ref, w3_ref, b3_ref, w4_ref, b4_ref,
                  o_ref, acc_ref):
    k = pl.program_id(1)

    @pl.when(k == 0)
    def _():
        acc_ref[...] = jnp.zeros_like(acc_ref)

    acc_ref[...] += jnp.dot(adj_ref[...], h_ref[...],
                            preferred_element_type=jnp.float32)

    @pl.when(k == pl.num_programs(1) - 1)
    def _():
        g = jnp.dot(acc_ref[...].astype(jnp.bfloat16), w3_ref[...],
                    preferred_element_type=jnp.float32) + b3_ref[...]
        g = jnp.maximum(g, 0.0)
        y = jnp.dot(g.astype(jnp.bfloat16), w4_ref[...],
                    preferred_element_type=jnp.float32) + b4_ref[...]
        o_ref[...] = y.astype(o_ref.dtype)


# --------------------------------------------------------------------------
# Wrapper
# --------------------------------------------------------------------------
def gnn_forward(x, adj, params, *, tm=128, tk=128):
    """x: (N, F) f32, adj: (N, N) f32.
    params: weights stored (in, out) f32, biases stored (1, out) f32."""
    N, F = x.shape
    H = params["w1"].shape[1]
    assert adj.shape == (N, N)

    Fp = _round_up(F, LANE)
    Hp = _round_up(H, LANE)
    Np = _round_up(N, tm)

    bf16 = jnp.bfloat16
    x_p = _pad2(x, Np, Fp, bf16)
    adj_p = _pad2(adj, Np, Np, bf16)
    w1_p = _pad2(params["w1"], F, Hp, bf16)
    w1_p = _pad2(w1_p, Fp, Hp)                      # pad rows after cast (zeros)
    b1_p = _pad2(params["b1"], 1, Hp)
    w2_p = _pad2(params["w2"], Hp, Hp, bf16)
    b2_p = _pad2(params["b2"], 1, Hp)
    w3_p = _pad2(params["w3"], Hp, Hp, bf16)
    b3_p = _pad2(params["b3"], 1, Hp)
    w4_p = _pad2(params["w4"], Hp, Fp, bf16)
    b4_p = _pad2(params["b4"], 1, Fp)

    n_row_tiles = Np // tm
    n_k_tiles = Np // tk

    # ---- phase 1: h = f1(x), row-parallel --------------------------------
    h = pl.pallas_call(
        f1_kernel,
        out_shape=jax.ShapeDtypeStruct((Np, Hp), bf16),
        grid=(n_row_tiles,),
        in_specs=[
            pl.BlockSpec((tm, Fp), lambda i: (i, 0)),   # x tile
            pl.BlockSpec((Fp, Hp), lambda i: (0, 0)),   # w1
            pl.BlockSpec((1, Hp), lambda i: (0, 0)),    # b1
            pl.BlockSpec((Hp, Hp), lambda i: (0, 0)),   # w2
            pl.BlockSpec((1, Hp), lambda i: (0, 0)),    # b2
        ],
        out_specs=pl.BlockSpec((tm, Hp), lambda i: (i, 0)),
        compiler_params=pltpu.CompilerParams(
            dimension_semantics=("parallel",)),
    )(x_p, w1_p, b1_p, w2_p, b2_p)

    # ---- phase 2: y = f2(adj @ h), row-parallel x K-reduction ------------
    y_p = pl.pallas_call(
        agg_f2_kernel,
        out_shape=jax.ShapeDtypeStruct((Np, Fp), jnp.float32),
        grid=(n_row_tiles, n_k_tiles),
        in_specs=[
            pl.BlockSpec((tm, tk), lambda i, k: (i, k)),   # adj tile
            pl.BlockSpec((tk, Hp), lambda i, k: (k, 0)),   # h tile
            pl.BlockSpec((Hp, Hp), lambda i, k: (0, 0)),   # w3
            pl.BlockSpec((1, Hp), lambda i, k: (0, 0)),    # b3
            pl.BlockSpec((Hp, Fp), lambda i, k: (0, 0)),   # w4
            pl.BlockSpec((1, Fp), lambda i, k: (0, 0)),    # b4
        ],
        out_specs=pl.BlockSpec((tm, Fp), lambda i, k: (i, 0)),
        scratch_shapes=[pltpu.VMEM((tm, Hp), jnp.float32)],
        compiler_params=pltpu.CompilerParams(
            dimension_semantics=("parallel", "arbitrary")),
    )(adj_p, h, w3_p, b3_p, w4_p, b4_p)

    return y_p[:N, :F]


gnn_forward_jit = jax.jit(functools.partial(gnn_forward))


# --------------------------------------------------------------------------
# Params / reference
# --------------------------------------------------------------------------
def init_params(key, feature_dim, ode_hid_dim):
    """Weights stored (in, out) (transposed PyTorch layout); biases (1, out)."""
    ks = jax.random.split(key, 8)

    def lin(kw, kb, fan_in, fan_out):
        bound = 1.0 / jnp.sqrt(fan_in)
        w = jax.random.uniform(kw, (fan_in, fan_out), jnp.float32, -bound, bound)
        b = jax.random.uniform(kb, (1, fan_out), jnp.float32, -bound, bound)
        return w, b

    w1, b1 = lin(ks[0], ks[1], feature_dim, ode_hid_dim)
    w2, b2 = lin(ks[2], ks[3], ode_hid_dim, ode_hid_dim)
    w3, b3 = lin(ks[4], ks[5], ode_hid_dim, ode_hid_dim)
    w4, b4 = lin(ks[6], ks[7], ode_hid_dim, feature_dim)
    return dict(w1=w1, b1=b1, w2=w2, b2=b2, w3=w3, b3=b3, w4=w4, b4=b4)


def gnn_reference(x, adj, p):
    h = jnp.maximum(x @ p["w1"] + p["b1"], 0.0)
    h = h @ p["w2"] + p["b2"]
    h = adj @ h
    h = jnp.maximum(h @ p["w3"] + p["b3"], 0.0)
    return h @ p["w4"] + p["b4"]


if __name__ == "__main__":
    N = 256            # number of graph nodes (batched to keep the MXU fed)
    feature_dim = 16
    ode_hid_dim = 32

    key = jax.random.PRNGKey(0)
    kx, kadj, kp = jax.random.split(key, 3)

    x = jax.random.normal(kx, (N, feature_dim), jnp.float32)
    adj = jax.random.uniform(kadj, (N, N), jnp.float32)
    # row-normalize so it looks like a graph propagation matrix
    adj = adj / jnp.sum(adj, axis=-1, keepdims=True)

    params = init_params(kp, feature_dim, ode_hid_dim)

    out = gnn_forward_jit(x, adj, params)
    jax.block_until_ready(out)

    ref = gnn_reference(x, adj, params)
    assert out.shape == (N, feature_dim)
    # bf16 MXU operands with f32 accumulation -> loose-ish tolerance vs f32 ref
    assert jnp.allclose(out, ref, atol=3e-2, rtol=3e-2), (
        "mismatch vs JAX reference: max abs err "
        f"{float(jnp.max(jnp.abs(out - ref)))}")

    print("KERNEL_OK")
</pallas_src>

<mosaic_0001>
module attributes {stable_mosaic.version = 11 : i64} {
  func.func @agg_f2_kernel(%arg0: i32, %arg1: i32, %arg2: memref<128x128xbf16, #tpu.memory_space<vmem>>, %arg3: memref<128x128xbf16, #tpu.memory_space<vmem>>, %arg4: memref<128x128xbf16, #tpu.memory_space<vmem>>, %arg5: memref<1x128xf32, #tpu.memory_space<vmem>>, %arg6: memref<128x128xbf16, #tpu.memory_space<vmem>>, %arg7: memref<1x128xf32, #tpu.memory_space<vmem>>, %arg8: memref<128x128xf32, #tpu.memory_space<vmem>>, %arg9: memref<128x128xf32, #tpu.memory_space<vmem>>) attributes {dimension_semantics = [#tpu.dimension_semantics<parallel>, #tpu.dimension_semantics<arbitrary>], iteration_bounds = array<i64: 2, 2>, scalar_prefetch = 0 : i64, scratch_operands = 1 : i64, tpu.core_type = #tpu.core_type<tc>, window_params = [{transform_indices = @transform_0, window_bounds = array<i64: 128, 128>}, {transform_indices = @transform_1, window_bounds = array<i64: 128, 128>}, {pipeline_mode = #tpu.pipeline_mode<synchronous>, transform_indices = @transform_2, window_bounds = array<i64: 128, 128>}, {pipeline_mode = #tpu.pipeline_mode<synchronous>, transform_indices = @transform_3, window_bounds = array<i64: 1, 128>}, {pipeline_mode = #tpu.pipeline_mode<synchronous>, transform_indices = @transform_4, window_bounds = array<i64: 128, 128>}, {pipeline_mode = #tpu.pipeline_mode<synchronous>, transform_indices = @transform_5, window_bounds = array<i64: 1, 128>}, {transform_indices = @transform_6, window_bounds = array<i64: 128, 128>}]} {
    %c0_i32 = arith.constant 0 : i32
    %0 = arith.cmpi eq, %arg1, %c0_i32 : i32
    %1 = arith.extui %0 : i1 to i32
    %c0_i32_0 = arith.constant 0 : i32
    %2 = arith.cmpi ne, %1, %c0_i32_0 : i32
    scf.if %2 {
      %cst_9 = arith.constant 0.000000e+00 : f32
      %12 = vector.broadcast %cst_9 : f32 to vector<128x128xf32>
      %c0_10 = arith.constant 0 : index
      %c0_11 = arith.constant 0 : index
      %13 = vector.load %arg9[%c0_10, %c0_11] : memref<128x128xf32, #tpu.memory_space<vmem>>, vector<128x128xf32>
      tpu.vector_store %arg9[%c0_10, %c0_11], %12 {strides = array<i32>} : memref<128x128xf32, #tpu.memory_space<vmem>>, vector<128x128xf32>,
    } else {
    }
    %c0 = arith.constant 0 : index
    %c0_1 = arith.constant 0 : index
    %3 = vector.load %arg9[%c0, %c0_1] : memref<128x128xf32, #tpu.memory_space<vmem>>, vector<128x128xf32>
    %c0_2 = arith.constant 0 : index
    %c0_3 = arith.constant 0 : index
    %4 = vector.load %arg2[%c0_2, %c0_3] : memref<128x128xbf16, #tpu.memory_space<vmem>>, vector<128x128xbf16>
    %c0_4 = arith.constant 0 : index
    %c0_5 = arith.constant 0 : index
    %5 = vector.load %arg3[%c0_4, %c0_5] : memref<128x128xbf16, #tpu.memory_space<vmem>>, vector<128x128xbf16>
    %cst = arith.constant dense<0.000000e+00> : vector<128x128xf32>
    %6 = tpu.matmul %4, %5, %cst {dimension_numbers = #tpu.dot_dimension_numbers<[1], [0], [0], [1], [0, 0, 1, 1], [], []>} : vector<128x128xbf16>, vector<128x128xbf16>, vector<128x128xf32> -> vector<128x128xf32>
    %7 = arith.addf %3, %6 : vector<128x128xf32>
    %c0_6 = arith.constant 0 : index
    %c0_7 = arith.constant 0 : index
    %8 = vector.load %arg9[%c0_6, %c0_7] : memref<128x128xf32, #tpu.memory_space<vmem>>, vector<128x128xf32>
    tpu.vector_store %arg9[%c0_6, %c0_7], %7 {strides = array<i32>} : memref<128x128xf32, #tpu.memory_space<vmem>>, vector<128x128xf32>,
    %c1_i32 = arith.constant 1 : i32
    %9 = arith.cmpi eq, %arg1, %c1_i32 : i32
    %10 = arith.extui %9 : i1 to i32
    %c0_i32_8 = arith.constant 0 : i32
    %11 = arith.cmpi ne, %10, %c0_i32_8 : i32
    scf.if %11 {
      %c0_9 = arith.constant 0 : index
      %c0_10 = arith.constant 0 : index
      %12 = vector.load %arg9[%c0_9, %c0_10] : memref<128x128xf32, #tpu.memory_space<vmem>>, vector<128x128xf32>
      %13 = arith.truncf %12 : vector<128x128xf32> to vector<128x128xbf16>
      %c0_11 = arith.constant 0 : index
      %c0_12 = arith.constant 0 : index
      %14 = vector.load %arg4[%c0_11, %c0_12] : memref<128x128xbf16, #tpu.memory_space<vmem>>, vector<128x128xbf16>
      %cst_13 = arith.constant dense<0.000000e+00> : vector<128x128xf32>
      %15 = tpu.matmul %13, %14, %cst_13 {dimension_numbers = #tpu.dot_dimension_numbers<[1], [0], [0], [1], [0, 0, 1, 1], [], []>} : vector<128x128xbf16>, vector<128x128xbf16>, vector<128x128xf32> -> vector<128x128xf32>
      %c0_14 = arith.constant 0 : index
      %c0_15 = arith.constant 0 : index
      %16 = vector.load %arg5[%c0_14, %c0_15] : memref<1x128xf32, #tpu.memory_space<vmem>>, vector<1x128xf32>
      %17 = vector.broadcast %16 : vector<1x128xf32> to vector<128x128xf32>
      %18 = arith.addf %15, %17 : vector<128x128xf32>
      %cst_16 = arith.constant 0.000000e+00 : f32
      %19 = vector.broadcast %cst_16 : f32 to vector<128x128xf32>
      %20 = arith.maximumf %18, %19 : vector<128x128xf32>
      %21 = arith.truncf %20 : vector<128x128xf32> to vector<128x128xbf16>
      %c0_17 = arith.constant 0 : index
      %c0_18 = arith.constant 0 : index
      %22 = vector.load %arg6[%c0_17, %c0_18] : memref<128x128xbf16, #tpu.memory_space<vmem>>, vector<128x128xbf16>
      %cst_19 = arith.constant dense<0.000000e+00> : vector<128x128xf32>
      %23 = tpu.matmul %21, %22, %cst_19 {dimension_numbers = #tpu.dot_dimension_numbers<[1], [0], [0], [1], [0, 0, 1, 1], [], []>} : vector<128x128xbf16>, vector<128x128xbf16>, vector<128x128xf32> -> vector<128x128xf32>
      %c0_20 = arith.constant 0 : index
      %c0_21 = arith.constant 0 : index
      %24 = vector.load %arg7[%c0_20, %c0_21] : memref<1x128xf32, #tpu.memory_space<vmem>>, vector<1x128xf32>
      %25 = vector.broadcast %24 : vector<1x128xf32> to vector<128x128xf32>
      %26 = arith.addf %23, %25 : vector<128x128xf32>
      %c0_22 = arith.constant 0 : index
      %c0_23 = arith.constant 0 : index
      %27 = vector.load %arg8[%c0_22, %c0_23] : memref<128x128xf32, #tpu.memory_space<vmem>>, vector<128x128xf32>
      tpu.vector_store %arg8[%c0_22, %c0_23], %26 {strides = array<i32>} : memref<128x128xf32, #tpu.memory_space<vmem>>, vector<128x128xf32>,
    } else {
    }
    return
  }
  func.func @transform_0(%arg0: i32, %arg1: i32) -> (i32, i32) {
    %c0_i32 = arith.constant 0 : i32
    return %arg0, %arg1 : i32, i32
  }
  func.func @transform_1(%arg0: i32, %arg1: i32) -> (i32, i32) {
    %c0_i32 = arith.constant 0 : i32
    %c0_i32_0 = arith.constant 0 : i32
    return %arg1, %c0_i32 : i32, i32
  }
  func.func @transform_2(%arg0: i32, %arg1: i32) -> (i32, i32) {
    %c0_i32 = arith.constant 0 : i32
    %c0_i32_0 = arith.constant 0 : i32
    %c0_i32_1 = arith.constant 0 : i32
    return %c0_i32, %c0_i32_0 : i32, i32
  }
  func.func @transform_3(%arg0: i32, %arg1: i32) -> (i32, i32) {
    %c0_i32 = arith.constant 0 : i32
    %c0_i32_0 = arith.constant 0 : i32
    %c0_i32_1 = arith.constant 0 : i32
    return %c0_i32, %c0_i32_0 : i32, i32
  }
  func.func @transform_4(%arg0: i32, %arg1: i32) -> (i32, i32) {
    %c0_i32 = arith.constant 0 : i32
    %c0_i32_0 = arith.constant 0 : i32
    %c0_i32_1 = arith.constant 0 : i32
    return %c0_i32, %c0_i32_0 : i32, i32
  }
  func.func @transform_5(%arg0: i32, %arg1: i32) -> (i32, i32) {
    %c0_i32 = arith.constant 0 : i32
    %c0_i32_0 = arith.constant 0 : i32
    %c0_i32_1 = arith.constant 0 : i32
    return %c0_i32, %c0_i32_0 : i32, i32
  }
  func.func @transform_6(%arg0: i32, %arg1: i32) -> (i32, i32) {
    %c0_i32 = arith.constant 0 : i32
    %c0_i32_0 = arith.constant 0 : i32
    return %arg0, %c0_i32 : i32, i32
  }
}

module attributes {stable_mosaic.version = 11 : i64} {
  func.func @f1_kernel(%arg0: i32, %arg1: memref<128x128xbf16, #tpu.memory_space<vmem>>, %arg2: memref<128x128xbf16, #tpu.memory_space<vmem>>, %arg3: memref<1x128xf32, #tpu.memory_space<vmem>>, %arg4: memref<128x128xbf16, #tpu.memory_space<vmem>>, %arg5: memref<1x128xf32, #tpu.memory_space<vmem>>, %arg6: memref<128x128xbf16, #tpu.memory_space<vmem>>) attributes {dimension_semantics = [#tpu.dimension_semantics<parallel>], iteration_bounds = array<i64: 2>, scalar_prefetch = 0 : i64, scratch_operands = 0 : i64, tpu.core_type = #tpu.core_type<tc>, window_params = [{transform_indices = @transform_0, window_bounds = array<i64: 128, 128>}, {pipeline_mode = #tpu.pipeline_mode<synchronous>, transform_indices = @transform_1, window_bounds = array<i64: 128, 128>}, {pipeline_mode = #tpu.pipeline_mode<synchronous>, transform_indices = @transform_2, window_bounds = array<i64: 1, 128>}, {pipeline_mode = #tpu.pipeline_mode<synchronous>, transform_indices = @transform_3, window_bounds = array<i64: 128, 128>}, {pipeline_mode = #tpu.pipeline_mode<synchronous>, transform_indices = @transform_4, window_bounds = array<i64: 1, 128>}, {transform_indices = @transform_5, window_bounds = array<i64: 128, 128>}]} {
    %c0 = arith.constant 0 : index
    %c0_0 = arith.constant 0 : index
    %0 = vector.load %arg1[%c0, %c0_0] : memref<128x128xbf16, #tpu.memory_space<vmem>>, vector<128x128xbf16>
    %c0_1 = arith.constant 0 : index
    %c0_2 = arith.constant 0 : index
    %1 = vector.load %arg2[%c0_1, %c0_2] : memref<128x128xbf16, #tpu.memory_space<vmem>>, vector<128x128xbf16>
    %cst = arith.constant dense<0.000000e+00> : vector<128x128xf32>
    %2 = tpu.matmul %0, %1, %cst {dimension_numbers = #tpu.dot_dimension_numbers<[1], [0], [0], [1], [0, 0, 1, 1], [], []>} : vector<128x128xbf16>, vector<128x128xbf16>, vector<128x128xf32> -> vector<128x128xf32>
    %c0_3 = arith.constant 0 : index
    %c0_4 = arith.constant 0 : index
    %3 = vector.load %arg3[%c0_3, %c0_4] : memref<1x128xf32, #tpu.memory_space<vmem>>, vector<1x128xf32>
    %4 = vector.broadcast %3 : vector<1x128xf32> to vector<128x128xf32>
    %5 = arith.addf %2, %4 : vector<128x128xf32>
    %cst_5 = arith.constant 0.000000e+00 : f32
    %6 = vector.broadcast %cst_5 : f32 to vector<128x128xf32>
    %7 = arith.maximumf %5, %6 : vector<128x128xf32>
    %8 = arith.truncf %7 : vector<128x128xf32> to vector<128x128xbf16>
    %c0_6 = arith.constant 0 : index
    %c0_7 = arith.constant 0 : index
    %9 = vector.load %arg4[%c0_6, %c0_7] : memref<128x128xbf16, #tpu.memory_space<vmem>>, vector<128x128xbf16>
    %cst_8 = arith.constant dense<0.000000e+00> : vector<128x128xf32>
    %10 = tpu.matmul %8, %9, %cst_8 {dimension_numbers = #tpu.dot_dimension_numbers<[1], [0], [0], [1], [0, 0, 1, 1], [], []>} : vector<128x128xbf16>, vector<128x128xbf16>, vector<128x128xf32> -> vector<128x128xf32>
    %c0_9 = arith.constant 0 : index
    %c0_10 = arith.constant 0 : index
    %11 = vector.load %arg5[%c0_9, %c0_10] : memref<1x128xf32, #tpu.memory_space<vmem>>, vector<1x128xf32>
    %12 = vector.broadcast %11 : vector<1x128xf32> to vector<128x128xf32>
    %13 = arith.addf %10, %12 : vector<128x128xf32>
    %14 = arith.truncf %13 : vector<128x128xf32> to vector<128x128xbf16>
    %c0_11 = arith.constant 0 : index
    %c0_12 = arith.constant 0 : index
    %15 = vector.load %arg6[%c0_11, %c0_12] : memref<128x128xbf16, #tpu.memory_space<vmem>>, vector<128x128xbf16>
    tpu.vector_store %arg6[%c0_11, %c0_12], %14 {strides = array<i32>} : memref<128x128xbf16, #tpu.memory_space<vmem>>, vector<128x128xbf16>,
    return
  }
  func.func @transform_0(%arg0: i32) -> (i32, i32) {
    %c0_i32 = arith.constant 0 : i32
    %c0_i32_0 = arith.constant 0 : i32
    return %arg0, %c0_i32 : i32, i32
  }
  func.func @transform_1(%arg0: i32) -> (i32, i32) {
    %c0_i32 = arith.constant 0 : i32
    %c0_i32_0 = arith.constant 0 : i32
    %c0_i32_1 = arith.constant 0 : i32
    return %c0_i32, %c0_i32_0 : i32, i32
  }
  func.func @transform_2(%arg0: i32) -> (i32, i32) {
    %c0_i32 = arith.constant 0 : i32
    %c0_i32_0 = arith.constant 0 : i32
    %c0_i32_1 = arith.constant 0 : i32
    return %c0_i32, %c0_i32_0 : i32, i32
  }
  func.func @transform_3(%arg0: i32) -> (i32, i32) {
    %c0_i32 = arith.constant 0 : i32
    %c0_i32_0 = arith.constant 0 : i32
    %c0_i32_1 = arith.constant 0 : i32
    return %c0_i32, %c0_i32_0 : i32, i32
  }
  func.func @transform_4(%arg0: i32) -> (i32, i32) {
    %c0_i32 = arith.constant 0 : i32
    %c0_i32_0 = arith.constant 0 : i32
    %c0_i32_1 = arith.constant 0 : i32
    return %c0_i32, %c0_i32_0 : i32, i32
  }
  func.func @transform_5(%arg0: i32) -> (i32, i32) {
    %c0_i32 = arith.constant 0 : i32
    %c0_i32_0 = arith.constant 0 : i32
    return %arg0, %c0_i32 : i32, i32
  }
}

</mosaic_0001>

<llo_original>
// kernel: gnn_forward.2
$region0: #{gnn_forward.2}
  #allocation0 [shape = 'u32[]', space=smem, size = 0x4, offset = 0x4, fixed_abs, tag = 'smem constant byte address 0x4 - core index']
  #allocation1 [shape = 'u32[72,128]{1,0:T(1,128)}', space=vmem, size = 0x9000, scoped, tag = 'internal scratch']
  %s0 = inlined_call_operand.vmem [shape: bf16[256,128], index: 0, kind: input, shape index: {}]
  %s1 = inlined_call_operand.vmem [shape: bf16[128,128], index: 1, kind: input, shape index: {}]
  %s2 = inlined_call_operand.vmem [shape: f32[1,128], index: 2, kind: input, shape index: {}]
  %s3 = inlined_call_operand.vmem [shape: bf16[128,128], index: 3, kind: input, shape index: {}]
  %s4 = inlined_call_operand.vmem [shape: f32[1,128], index: 4, kind: input, shape index: {}]
  %s5 = inlined_call_operand.vmem [shape: bf16[256,128], index: 5, kind: output, shape index: {}]
  %s6 = sld [smem:[#allocation0]]
  $region53: #{gnn_forward.2} parent=0
    _
  %s8 = ssub.s32 1, %s6
  %s9 = scalar_select 0, %s8, %s6
  loop: start=0, step=1, limit=4
  $region2: #{gnn_forward.2} parent=0 // loop_pre_header
    _
  $region3: #{gnn_forward.2} parent=0 // loop_header
    %s11 = sphi 0, %s15
    %p12 = scmp.ge.s32.totalorder %s11, 4
    %s21 = sphi 0, %s23
    %s24 = sphi 0, %s21
    %s25 = sphi 0, %s24
    %s41 = sphi 0, %s25
    %s45 = sphi 0, %s45
    %s47 = sphi 0, %s45
    %s48 = sphi 0, %s47
    %s62 = sphi 0, %s48
    %s66 = sphi 0, %s66
    %s68 = sphi 0, %s66
    %s69 = sphi 0, %s68
    %s83 = sphi 0, %s69
    %s87 = sphi 0, %s87
    %s89 = sphi 0, %s87
    %s90 = sphi 0, %s89
    %s104 = sphi 0, %s90
    %s108 = sphi 0, %s108
    %s110 = sphi 0, %s108
    %s111 = sphi 0, %s110
    %s125 = sphi 0, %s111
    %s131 = sphi 0, %s133
    %s134 = sphi 0, %s131
    %s135 = sphi 0, %s134
    %s151 = sphi 0, %s135
  $region4: #{gnn_forward.2} parent=0 // loop_header_branch
    %14 = sbr.rel (%p12) target = $region8
  $region5: #{gnn_forward.2} parent=0 // loop_body
    %s16 = ssub.s32 %s11, 1
    %s17 = ssub.s32 %s11, 2
    %s18 = sadd.s32 %s11, 1
    %s19 = ssub.s32 %s11, %s18
    %p20 = scmp.eq.s32.totalorder %s19, 0
    %s22 = sadd.s32 %s21, 1
    %s23 = scalar_select %p20, %s21, %s22
    %p26 = pneg %p20
    %p27 = scmp.eq.s32.totalorder %s11, 1
    %p28 = por %p26, %p27
    %p29 = scmp.ne.s32.totalorder %s21, %s24
    %p30 = scmp.eq.s32.totalorder %s11, 0
    %p31 = por %p29, %p30
    %p32 = scmp.ne.s32.totalorder %s21, %s24
    %p33 = scmp.eq.s32.totalorder %s16, 1
    %p34 = por %p32, %p33
    %p35 = scmp.ne.s32.totalorder %s24, %s25
    %p36 = scmp.eq.s32.totalorder %s16, 0
    %p37 = por %p35, %p36
    %p38 = scmp.ne.s32.totalorder %s24, %s25
    %p39 = scmp.eq.s32.totalorder %s17, 1
    %p40 = por %p38, %p39
    %p42 = scmp.ne.s32.totalorder %s25, %s41
    %p43 = scmp.eq.s32.totalorder %s17, 0
    %p44 = por %p42, %p43
    %s46 = sadd.s32 %s45, 1
    %p49 = scmp.eq.s32.totalorder %s11, 1
    %p50 = scmp.ne.s32.totalorder %s45, %s47
    %p51 = scmp.eq.s32.totalorder %s11, 0
    %p52 = por %p50, %p51
    %p53 = scmp.ne.s32.totalorder %s45, %s47
    %p54 = scmp.eq.s32.totalorder %s16, 1
    %p55 = por %p53, %p54
    %p56 = scmp.ne.s32.totalorder %s47, %s48
    %p57 = scmp.eq.s32.totalorder %s16, 0
    %p58 = por %p56, %p57
    %p59 = scmp.ne.s32.totalorder %s47, %s48
    %p60 = scmp.eq.s32.totalorder %s17, 1
    %p61 = por %p59, %p60
    %p63 = scmp.ne.s32.totalorder %s48, %s62
    %p64 = scmp.eq.s32.totalorder %s17, 0
    %p65 = por %p63, %p64
    %s67 = sadd.s32 %s66, 1
    %p70 = scmp.eq.s32.totalorder %s11, 1
    %p71 = scmp.ne.s32.totalorder %s66, %s68
    %p72 = scmp.eq.s32.totalorder %s11, 0
    %p73 = por %p71, %p72
    %p74 = scmp.ne.s32.totalorder %s66, %s68
    %p75 = scmp.eq.s32.totalorder %s16, 1
    %p76 = por %p74, %p75
    %p77 = scmp.ne.s32.totalorder %s68, %s69
    %p78 = scmp.eq.s32.totalorder %s16, 0
    %p79 = por %p77, %p78
    %p80 = scmp.ne.s32.totalorder %s68, %s69
    %p81 = scmp.eq.s32.totalorder %s17, 1
    %p82 = por %p80, %p81
    %p84 = scmp.ne.s32.totalorder %s69, %s83
    %p85 = scmp.eq.s32.totalorder %s17, 0
    %p86 = por %p84, %p85
    %s88 = sadd.s32 %s87, 1
    %p91 = scmp.eq.s32.totalorder %s11, 1
    %p92 = scmp.ne.s32.totalorder %s87, %s89
    %p93 = scmp.eq.s32.totalorder %s11, 0
    %p94 = por %p92, %p93
    %p95 = scmp.ne.s32.totalorder %s87, %s89
    %p96 = scmp.eq.s32.totalorder %s16, 1
    %p97 = por %p95, %p96
    %p98 = scmp.ne.s32.totalorder %s89, %s90
    %p99 = scmp.eq.s32.totalorder %s16, 0
    %p100 = por %p98, %p99
    %p101 = scmp.ne.s32.totalorder %s89, %s90
    %p102 = scmp.eq.s32.totalorder %s17, 1
    %p103 = por %p101, %p102
    %p105 = scmp.ne.s32.totalorder %s90, %s104
    %p106 = scmp.eq.s32.totalorder %s17, 0
    %p107 = por %p105, %p106
    %s109 = sadd.s32 %s108, 1
    %p112 = scmp.eq.s32.totalorder %s11, 1
    %p113 = scmp.ne.s32.totalorder %s108, %s110
    %p114 = scmp.eq.s32.totalorder %s11, 0
    %p115 = por %p113, %p114
    %p116 = scmp.ne.s32.totalorder %s108, %s110
    %p117 = scmp.eq.s32.totalorder %s16, 1
    %p118 = por %p116, %p117
    %p119 = scmp.ne.s32.totalorder %s110, %s111
    %p120 = scmp.eq.s32.totalorder %s16, 0
    %p121 = por %p119, %p120
    %p122 = scmp.ne.s32.totalorder %s110, %s111
    %p123 = scmp.eq.s32.totalorder %s17, 1
    %p124 = por %p122, %p123
    %p126 = scmp.ne.s32.totalorder %s111, %s125
    %p127 = scmp.eq.s32.totalorder %s17, 0
    %p128 = por %p126, %p127
    %s129 = ssub.s32 %s11, %s18
    %p130 = scmp.eq.s32.totalorder %s129, 0
    %s132 = sadd.s32 %s131, 1
    %s133 = scalar_select %p130, %s131, %s132
    %p136 = pneg %p130
    %p137 = scmp.eq.s32.totalorder %s11, 1
    %p138 = por %p136, %p137
    %p139 = scmp.ne.s32.totalorder %s131, %s134
    %p140 = scmp.eq.s32.totalorder %s11, 0
    %p141 = por %p139, %p140
    %p142 = scmp.ne.s32.totalorder %s131, %s134
    %p143 = scmp.eq.s32.totalorder %s16, 1
    %p144 = por %p142, %p143
    %p145 = scmp.ne.s32.totalorder %s134, %s135
    %p146 = scmp.eq.s32.totalorder %s16, 0
    %p147 = por %p145, %p146
    %p148 = scmp.ne.s32.totalorder %s134, %s135
    %p149 = scmp.eq.s32.totalorder %s17, 1
    %p150 = por %p148, %p149
    %p152 = scmp.ne.s32.totalorder %s135, %s151
    %p153 = scmp.eq.s32.totalorder %s17, 0
    %p154 = por %p152, %p153
    %p155 = scmp.le.s32.totalorder 1, %s11
    %p156 = scmp.lt.s32.totalorder %s11, 3
    %p157 = pnand %p155, %p156
    %p158 = pneg %p157
    // Predicated region
    $region9: #{gnn_forward.2} parent=5 // pred_check
      _
    $region10: #{gnn_forward.2} parent=5 // pred_check_branch
      %160 = sbr.rel (%p157) target = $region12
    $region11: #{gnn_forward.2} parent=5 // pred_region
      %s161 = ssub.s32 %s11, 1
      // Predicated region
      $region13: #{gnn_forward.2} parent=11 // pred_check
        %p162 = pneg %p58
      $region14: #{gnn_forward.2} parent=11 // pred_check_branch
        %164 = sbr.rel (%p162) target = $region16
      $region15: #{gnn_forward.2} parent=11 // pred_region
        _
      $region16: #{gnn_forward.2} parent=11 // pred_fallthru
        _
      // Predicated region
      $region17: #{gnn_forward.2} parent=11 // pred_check
        %p165 = pneg %p79
      $region18: #{gnn_forward.2} parent=11 // pred_check_branch
        %167 = sbr.rel (%p165) target = $region20
      $region19: #{gnn_forward.2} parent=11 // pred_region
        _
      $region20: #{gnn_forward.2} parent=11 // pred_fallthru
        _
      // Predicated region
      $region21: #{gnn_forward.2} parent=11 // pred_check
        %p168 = pneg %p100
      $region22: #{gnn_forward.2} parent=11 // pred_check_branch
        %170 = sbr.rel (%p168) target = $region24
      $region23: #{gnn_forward.2} parent=11 // pred_region
        _
      $region24: #{gnn_forward.2} parent=11 // pred_fallthru
        _
      // Predicated region
      $region25: #{gnn_forward.2} parent=11 // pred_check
        %p171 = pneg %p121
      $region26: #{gnn_forward.2} parent=11 // pred_check_branch
        %173 = sbr.rel (%p171) target = $region28
      $region27: #{gnn_forward.2} parent=11 // pred_region
        _
      $region28: #{gnn_forward.2} parent=11 // pred_fallthru
        _
    $region12: #{gnn_forward.2} parent=5 // pred_fallthru
      _
    %p174 = scmp.lt.s32.totalorder %s11, 2
    // Predicated region
    $region29: #{gnn_forward.2} parent=5 // pred_check
      %p175 = pneg %p174
    $region30: #{gnn_forward.2} parent=5 // pred_check_branch
      %177 = sbr.rel (%p175) target = $region32
    $region31: #{gnn_forward.2} parent=5 // pred_region
      // Predicated region
      $region33: #{gnn_forward.2} parent=31 // pred_check
        %p178 = pneg %p31
      $region34: #{gnn_forward.2} parent=31 // pred_check_branch
        %180 = sbr.rel (%p178) target = $region36
      $region35: #{gnn_forward.2} parent=31 // pred_region
        %s181 = smul.u32 16, %s11
        %p182 = scmp.lt.s32.totalorder %s181, 31
        %s183 = scalar_select %p182, %s181, 31
        %s184 = smul.addr %s183, 4
        %s185 = scalar_lea.vmem %s0, %s184
        %s186 = smul.u32 16, %s11
      $region36: #{gnn_forward.2} parent=31 // pred_fallthru
        _
    $region32: #{gnn_forward.2} parent=5 // pred_fallthru
      _
    %p187 = scmp.le.s32.totalorder 1, %s11
    %p188 = scmp.lt.s32.totalorder %s11, 3
    %p189 = pnand %p187, %p188
    %p190 = pneg %p189
    // Predicated region
    $region37: #{gnn_forward.2} parent=5 // pred_check
      _
    $region38: #{gnn_forward.2} parent=5 // pred_check_branch
      %192 = sbr.rel (%p189) target = $region40
    $region39: #{gnn_forward.2} parent=5 // pred_region
      %s193 = ssub.s32 %s11, 1
      %s194 = smul.u32 16, %s16
      %p195 = scmp.lt.s32.totalorder %s194, 31
      %s196 = scalar_select %p195, %s194, 31
      %s197 = smul.addr %s196, 4
      %s198 = scalar_lea.vmem %s0, %s197
      %p199 = pneg %p37
      %p200 = pneg %p34
      %p201 = pneg %p58
      %p202 = pneg %p55
      %p203 = pneg %p79
      %p204 = pneg %p76
      %p205 = pneg %p100
      %p206 = pneg %p97
      %p207 = pneg %p121
      %p208 = pneg %p118
      %p209 = pneg %p147
      %p210 = pneg %p144
      %s211 = smul.u32 16, %s16
      %p212 = scmp.lt.s32.totalorder %s211, 31
      %s213 = scalar_select %p212, %s211, 31
      %s214 = smul.addr %s213, 4
      %s215 = scalar_lea.vmem %s5, %s214
      %s216 = smul.u32 16, %s16
      %p217 = scmp.lt.s32.totalorder %s216, 31
      %s218 = scalar_select %p217, %s216, 31
      %s219 = smul.addr %s218, 4
      %s220 = scalar_lea.vmem %s0, %s219
      %s221 = smul.u32 16, %s16
      %s222 = smul.u32 16, %s16
      %p223 = scmp.lt.s32.totalorder %s222, 31
      %s224 = scalar_select %p223, %s222, 31
      %s225 = smul.addr %s224, 4
      %s226 = scalar_lea.vmem %s5, %s225
      %s227 = smul.u32 16, %s16
      %v228 = vld [vmem:[%s220] sm:$0xf]
      %v229 = vld [vmem:[%s220 + $0x4] sm:$0xf]
      %v230 = vld [vmem:[%s220 + $0x8] sm:$0xf]
      %v231 = vld [vmem:[%s220 + $0xc] sm:$0xf]
      %v232 = vld [vmem:[%s220 + $0x10] sm:$0xf]
      %v233 = vld [vmem:[%s220 + $0x14] sm:$0xf]
      %v234 = vld [vmem:[%s220 + $0x18] sm:$0xf]
      %v235 = vld [vmem:[%s220 + $0x1c] sm:$0xf]
      %v236 = vld [vmem:[%s220 + $0x20] sm:$0xf]
      %v237 = vld [vmem:[%s220 + $0x24] sm:$0xf]
      %v238 = vld [vmem:[%s220 + $0x28] sm:$0xf]
      %v239 = vld [vmem:[%s220 + $0x2c] sm:$0xf]
      %v240 = vld [vmem:[%s220 + $0x30] sm:$0xf]
      %v241 = vld [vmem:[%s220 + $0x34] sm:$0xf]
      %v242 = vld [vmem:[%s220 + $0x38] sm:$0xf]
      %v243 = vld [vmem:[%s220 + $0x3c] sm:$0xf]
      %v244 = vld [vmem:[%s1] sm:$0xf]
      %v245 = vld [vmem:[%s1 + $0x4] sm:$0xf]
      %v246 = vld [vmem:[%s1 + $0x8] sm:$0xf]
      %v247 = vld [vmem:[%s1 + $0xc] sm:$0xf]
      %v248 = vld [vmem:[%s1 + $0x10] sm:$0xf]
      %v249 = vld [vmem:[%s1 + $0x14] sm:$0xf]
      %v250 = vld [vmem:[%s1 + $0x18] sm:$0xf]
      %v251 = vld [vmem:[%s1 + $0x1c] sm:$0xf]
      %v252 = vld [vmem:[%s1 + $0x20] sm:$0xf]
      %v253 = vld [vmem:[%s1 + $0x24] sm:$0xf]
      %v254 = vld [vmem:[%s1 + $0x28] sm:$0xf]
      %v255 = vld [vmem:[%s1 + $0x2c] sm:$0xf]
      %v256 = vld [vmem:[%s1 + $0x30] sm:$0xf]
      %v257 = vld [vmem:[%s1 + $0x34] sm:$0xf]
      %v258 = vld [vmem:[%s1 + $0x38] sm:$0xf]
      %v259 = vld [vmem:[%s1 + $0x3c] sm:$0xf]
      %v260 = vld [vmem:[%s2] sm:$0x1]
      %v262 = vperm.slane %v260, 0
      %v280 = vunpack.c.l.b16 %v228
      %v281 = vunpack.c.l.b16 %v229
      %v282 = vunpack.c.l.b16 %v230
      %v283 = vunpack.c.l.b16 %v231
      %v284 = vunpack.c.l.b16 %v232
      %v285 = vunpack.c.l.b16 %v233
      %v286 = vunpack.c.l.b16 %v234
      %v287 = vunpack.c.l.b16 %v235
      %v288 = vunpack.c.l.b16 %v236
      %v289 = vunpack.c.l.b16 %v237
      %v290 = vunpack.c.l.b16 %v238
      %v291 = vunpack.c.l.b16 %v239
      %v292 = vunpack.c.l.b16 %v240
      %v293 = vunpack.c.l.b16 %v241
      %v294 = vunpack.c.l.b16 %v242
      %v295 = vunpack.c.l.b16 %v243
      %v296 = vpack.c.b16 %v281, %v280
      %v297 = vpack.c.b16 %v283, %v282
      %v298 = vpack.c.b16 %v285, %v284
      %v299 = vpack.c.b16 %v287, %v286
      %v300 = vpack.c.b16 %v289, %v288
      %v301 = vpack.c.b16 %v291, %v290
      %v302 = vpack.c.b16 %v293, %v292
      %v303 = vpack.c.b16 %v295, %v294
      %v328 = vunpack.c.l.b16 %v244
      %v329 = vunpack.c.l.b16 %v245
      %v330 = vunpack.c.l.b16 %v246
      %v331 = vunpack.c.l.b16 %v247
      %v332 = vunpack.c.l.b16 %v248
      %v333 = vunpack.c.l.b16 %v249
      %v334 = vunpack.c.l.b16 %v250
      %v335 = vunpack.c.l.b16 %v251
      %v336 = vunpack.c.l.b16 %v252
      %v337 = vunpack.c.l.b16 %v253
      %v338 = vunpack.c.l.b16 %v254
      %v339 = vunpack.c.l.b16 %v255
      %v340 = vunpack.c.l.b16 %v256
      %v341 = vunpack.c.l.b16 %v257
      %v342 = vunpack.c.l.b16 %v258
      %v343 = vunpack.c.l.b16 %v259
      %v344 = vpack.c.b16 %v329, %v328
      %v345 = vpack.c.b16 %v331, %v330
      %v346 = vpack.c.b16 %v333, %v332
      %v347 = vpack.c.b16 %v335, %v334
      %v348 = vpack.c.b16 %v337, %v336
      %v349 = vpack.c.b16 %v339, %v338
      %v350 = vpack.c.b16 %v341, %v340
      %v351 = vpack.c.b16 %v343, %v342
      %360 = vmatpush.bf16.msra.mxu0 %v351
      %361 = vmatpush.bf16.msra.mxu0 %v350
      %362 = vmatpush.bf16.msra.mxu0 %v349
      %363 = vmatpush.bf16.msra.mxu0 %v348
      %364 = vmatpush.bf16.msra.mxu0 %v347
      %365 = vmatpush.bf16.msra.mxu0 %v346
      %366 = vmatpush.bf16.msra.mxu0 %v345
      %367 = vmatpush.bf16.msra.mxu0 %v344
      %368 = vmatmul.bf16.gmra.mxu0 %v296
      %v369 = vpop.f32.mrf.mxu0
      %v370 = vadd.f32 %v262, %v369
      %v371 = vpop.f32.mrf.mxu0
      %v372 = vadd.f32 %v262, %v371
      %373 = vmatmul.bf16.gmra.mxu0 %v297
      %v374 = vpop.f32.mrf.mxu0
      %v375 = vadd.f32 %v262, %v374
      %v376 = vpop.f32.mrf.mxu0
      %v377 = vadd.f32 %v262, %v376
      %378 = vmatmul.bf16.gmra.mxu0 %v298
      %v379 = vpop.f32.mrf.mxu0
      %v380 = vadd.f32 %v262, %v379
      %v381 = vpop.f32.mrf.mxu0
      %v382 = vadd.f32 %v262, %v381
      %383 = vmatmul.bf16.gmra.mxu0 %v299
      %v384 = vpop.f32.mrf.mxu0
      %v385 = vadd.f32 %v262, %v384
      %v386 = vpop.f32.mrf.mxu0
      %v387 = vadd.f32 %v262, %v386
      %388 = vmatmul.bf16.gmra.mxu0 %v300
      %v389 = vpop.f32.mrf.mxu0
      %v390 = vadd.f32 %v262, %v389
      %v391 = vpop.f32.mrf.mxu0
      %v392 = vadd.f32 %v262, %v391
      %393 = vmatmul.bf16.gmra.mxu0 %v301
      %v394 = vpop.f32.mrf.mxu0
      %v395 = vadd.f32 %v262, %v394
      %v396 = vpop.f32.mrf.mxu0
      %v397 = vadd.f32 %v262, %v396
      %398 = vmatmul.bf16.gmra.mxu0 %v302
      %v399 = vpop.f32.mrf.mxu0
      %v400 = vadd.f32 %v262, %v399
      %v401 = vpop.f32.mrf.mxu0
      %v402 = vadd.f32 %v262, %v401
      %403 = vmatmul.bf16.gmra.mxu0 %v303
      %v404 = vpop.f32.mrf.mxu0
      %v405 = vadd.f32 %v262, %v404
      %v406 = vpop.f32.mrf.mxu0
      %v407 = vadd.f32 %v262, %v406
      %408 = vdwg.mxu0
      %v409 = vmax.f32 %v370, 0.0
      %v410 = vmax.f32 %v372, 0.0
      %v411 = vmax.f32 %v375, 0.0
      %v412 = vmax.f32 %v377, 0.0
      %v413 = vmax.f32 %v380, 0.0
      %v414 = vmax.f32 %v382, 0.0
      %v415 = vmax.f32 %v385, 0.0
      %v416 = vmax.f32 %v387, 0.0
      %v417 = vmax.f32 %v390, 0.0
      %v418 = vmax.f32 %v392, 0.0
      %v419 = vmax.f32 %v395, 0.0
      %v420 = vmax.f32 %v397, 0.0
      %v421 = vmax.f32 %v400, 0.0
      %v422 = vmax.f32 %v402, 0.0
      %v423 = vmax.f32 %v405, 0.0
      %v424 = vmax.f32 %v407, 0.0
      %v425 = vpack.c.bf16 %v410, %v409
      %v426 = vpack.c.bf16 %v412, %v411
      %v427 = vpack.c.bf16 %v414, %v413
      %v428 = vpack.c.bf16 %v416, %v415
      %v429 = vpack.c.bf16 %v418, %v417
      %v430 = vpack.c.bf16 %v420, %v419
      %v431 = vpack.c.bf16 %v422, %v421
      %v432 = vpack.c.bf16 %v424, %v423
      %v433 = vld [vmem:[%s3] sm:$0xf]
      %v434 = vld [vmem:[%s3 + $0x4] sm:$0xf]
      %v435 = vld [vmem:[%s3 + $0x8] sm:$0xf]
      %v436 = vld [vmem:[%s3 + $0xc] sm:$0xf]
      %v437 = vld [vmem:[%s3 + $0x10] sm:$0xf]
      %v438 = vld [vmem:[%s3 + $0x14] sm:$0xf]
      %v439 = vld [vmem:[%s3 + $0x18] sm:$0xf]
      %v440 = vld [vmem:[%s3 + $0x1c] sm:$0xf]
      %v441 = vld [vmem:[%s3 + $0x20] sm:$0xf]
      %v442 = vld [vmem:[%s3 + $0x24] sm:$0xf]
      %v443 = vld [vmem:[%s3 + $0x28] sm:$0xf]
      %v444 = vld [vmem:[%s3 + $0x2c] sm:$0xf]
      %v445 = vld [vmem:[%s3 + $0x30] sm:$0xf]
      %v446 = vld [vmem:[%s3 + $0x34] sm:$0xf]
      %v447 = vld [vmem:[%s3 + $0x38] sm:$0xf]
      %v448 = vld [vmem:[%s3 + $0x3c] sm:$0xf]
      %v449 = vld [vmem:[%s4] sm:$0x1]
      %v451 = vperm.slane %v449, 0
      %v469 = vunpack.c.l.b16 %v433
      %v470 = vunpack.c.l.b16 %v434
      %v471 = vunpack.c.l.b16 %v435
      %v472 = vunpack.c.l.b16 %v436
      %v473 = vunpack.c.l.b16 %v437
      %v474 = vunpack.c.l.b16 %v438
      %v475 = vunpack.c.l.b16 %v439
      %v476 = vunpack.c.l.b16 %v440
      %v477 = vunpack.c.l.b16 %v441
      %v478 = vunpack.c.l.b16 %v442
      %v479 = vunpack.c.l.b16 %v443
      %v480 = vunpack.c.l.b16 %v444
      %v481 = vunpack.c.l.b16 %v445
      %v482 = vunpack.c.l.b16 %v446
      %v483 = vunpack.c.l.b16 %v447
      %v484 = vunpack.c.l.b16 %v448
      %v485 = vpack.c.b16 %v470, %v469
      %v486 = vpack.c.b16 %v472, %v471
      %v487 = vpack.c.b16 %v474, %v473
      %v488 = vpack.c.b16 %v476, %v475
      %v489 = vpack.c.b16 %v478, %v477
      %v490 = vpack.c.b16 %v480, %v479
      %v491 = vpack.c.b16 %v482, %v481
      %v492 = vpack.c.b16 %v484, %v483
      %501 = vmatpush.bf16.msra.mxu0 %v492
      %502 = vmatpush.bf16.msra.mxu0 %v491
      %503 = vmatpush.bf16.msra.mxu0 %v490
      %504 = vmatpush.bf16.msra.mxu0 %v489
      %505 = vmatpush.bf16.msra.mxu0 %v488
      %506 = vmatpush.bf16.msra.mxu0 %v487
      %507 = vmatpush.bf16.msra.mxu0 %v486
      %508 = vmatpush.bf16.msra.mxu0 %v485
      %509 = vmatmul.bf16.gmra.mxu0 %v425
      %v510 = vpop.f32.mrf.mxu0
      %v511 = vadd.f32 %v451, %v510
      %v512 = vpop.f32.mrf.mxu0
      %v513 = vadd.f32 %v451, %v512
      %514 = vmatmul.bf16.gmra.mxu0 %v426
      %v515 = vpop.f32.mrf.mxu0
      %v516 = vadd.f32 %v451, %v515
      %v517 = vpop.f32.mrf.mxu0
      %v518 = vadd.f32 %v451, %v517
      %519 = vmatmul.bf16.gmra.mxu0 %v427
      %v520 = vpop.f32.mrf.mxu0
      %v521 = vadd.f32 %v451, %v520
      %v522 = vpop.f32.mrf.mxu0
      %v523 = vadd.f32 %v451, %v522
      %524 = vmatmul.bf16.gmra.mxu0 %v428
      %v525 = vpop.f32.mrf.mxu0
      %v526 = vadd.f32 %v451, %v525
      %v527 = vpop.f32.mrf.mxu0
      %v528 = vadd.f32 %v451, %v527
      %529 = vmatmul.bf16.gmra.mxu0 %v429
      %v530 = vpop.f32.mrf.mxu0
      %v531 = vadd.f32 %v451, %v530
      %v532 = vpop.f32.mrf.mxu0
      %v533 = vadd.f32 %v451, %v532
      %534 = vmatmul.bf16.gmra.mxu0 %v430
      %v535 = vpop.f32.mrf.mxu0
      %v536 = vadd.f32 %v451, %v535
      %v537 = vpop.f32.mrf.mxu0
      %v538 = vadd.f32 %v451, %v537
      %539 = vmatmul.bf16.gmra.mxu0 %v431
      %v540 = vpop.f32.mrf.mxu0
      %v541 = vadd.f32 %v451, %v540
      %v542 = vpop.f32.mrf.mxu0
      %v543 = vadd.f32 %v451, %v542
      %544 = vmatmul.bf16.gmra.mxu0 %v432
      %v545 = vpop.f32.mrf.mxu0
      %v546 = vadd.f32 %v451, %v545
      %v547 = vpop.f32.mrf.mxu0
      %v548 = vadd.f32 %v451, %v547
      %549 = vdwg.mxu0
      %v550 = vpack.c.bf16 %v511, %v511
      %v551 = vpack.c.bf16 %v513, %v513
      %v552 = vpack.c.bf16 %v516, %v516
      %v553 = vpack.c.bf16 %v518, %v518
      %v554 = vpack.c.bf16 %v521, %v521
      %v555 = vpack.c.bf16 %v523, %v523
      %v556 = vpack.c.bf16 %v526, %v526
      %v557 = vpack.c.bf16 %v528, %v528
      %v558 = vpack.c.bf16 %v531, %v531
      %v559 = vpack.c.bf16 %v533, %v533
      %v560 = vpack.c.bf16 %v536, %v536
      %v561 = vpack.c.bf16 %v538, %v538
      %v562 = vpack.c.bf16 %v541, %v541
      %v563 = vpack.c.bf16 %v543, %v543
      %v564 = vpack.c.bf16 %v546, %v546
      %v565 = vpack.c.bf16 %v548, %v548
      %566 = vst [vmem:[%s226] sm:$0xf] %v550
      %567 = vst [vmem:[%s226 + $0x4] sm:$0xf] %v551
      %568 = vst [vmem:[%s226 + $0x8] sm:$0xf] %v552
      %569 = vst [vmem:[%s226 + $0xc] sm:$0xf] %v553
      %570 = vst [vmem:[%s226 + $0x10] sm:$0xf] %v554
      %571 = vst [vmem:[%s226 + $0x14] sm:$0xf] %v555
      %572 = vst [vmem:[%s226 + $0x18] sm:$0xf] %v556
      %573 = vst [vmem:[%s226 + $0x1c] sm:$0xf] %v557
      %574 = vst [vmem:[%s226 + $0x20] sm:$0xf] %v558
      %575 = vst [vmem:[%s226 + $0x24] sm:$0xf] %v559
      %576 = vst [vmem:[%s226 + $0x28] sm:$0xf] %v560
      %577 = vst [vmem:[%s226 + $0x2c] sm:$0xf] %v561
      %578 = vst [vmem:[%s226 + $0x30] sm:$0xf] %v562
      %579 = vst [vmem:[%s226 + $0x34] sm:$0xf] %v563
      %580 = vst [vmem:[%s226 + $0x38] sm:$0xf] %v564
      %581 = vst [vmem:[%s226 + $0x3c] sm:$0xf] %v565
      %s582 = smul.u32 16, %s16
      %p583 = scmp.lt.s32.totalorder %s582, 31
      %s584 = scalar_select %p583, %s582, 31
      %s585 = smul.addr %s584, 4
      %s586 = scalar_lea.vmem %s5, %s585
      // Predicated region
      $region41: #{gnn_forward.2} parent=39 // pred_check
        %p587 = pneg %p144
      $region42: #{gnn_forward.2} parent=39 // pred_check_branch
        %589 = sbr.rel (%p587) target = $region44
      $region43: #{gnn_forward.2} parent=39 // pred_region
        %s590 = smul.u32 16, %s16
      $region44: #{gnn_forward.2} parent=39 // pred_fallthru
        _
    $region40: #{gnn_forward.2} parent=5 // pred_fallthru
      _
    %p591 = scmp.le.s32.totalorder 2, %s11
    // Predicated region
    $region45: #{gnn_forward.2} parent=5 // pred_check
      %p592 = pneg %p591
    $region46: #{gnn_forward.2} parent=5 // pred_check_branch
      %594 = sbr.rel (%p592) target = $region48
    $region47: #{gnn_forward.2} parent=5 // pred_region
      %s595 = ssub.s32 %s11, 2
      // Predicated region
      $region49: #{gnn_forward.2} parent=47 // pred_check
        %p596 = pneg %p150
      $region50: #{gnn_forward.2} parent=47 // pred_check_branch
        %598 = sbr.rel (%p596) target = $region52
      $region51: #{gnn_forward.2} parent=47 // pred_region
        %s599 = smul.u32 16, %s17
        %p600 = scmp.lt.s32.totalorder %s599, 31
        %s601 = scalar_select %p600, %s599, 31
        %s602 = smul.addr %s601, 4
        %s603 = scalar_lea.vmem %s5, %s602
      $region52: #{gnn_forward.2} parent=47 // pred_fallthru
        _
    $region48: #{gnn_forward.2} parent=5 // pred_fallthru
      _
  $region6: #{gnn_forward.2} parent=0 // loop_footer
    %s15 = sadd.s32 1, %s11
  $region7: #{gnn_forward.2} parent=0 // loop_footer_branch
    %10 = sbr.rel target = $region3
  $region8: #{gnn_forward.2} parent=0 // loop_exit
    _

// kernel: gnn_forward.3
$region0: #{gnn_forward.3}
  #allocation0 [shape = 'u32[]', space=smem, size = 0x4, offset = 0x4, fixed_abs, tag = 'smem constant byte address 0x4 - core index']
  #allocation1 [shape = 'u32[72,128]{1,0:T(1,128)}', space=vmem, size = 0x9000, scoped, tag = 'internal scratch']
  #allocation2 [shape = 'f32[128,128]{1,0:T(8,128)}', space=vmem, size = 0x10000, scoped, tag = 'scratch operand']
  %s0 = inlined_call_operand.vmem [shape: bf16[256,256], index: 0, kind: input, shape index: {}]
  %s1 = inlined_call_operand.vmem [shape: bf16[256,128], index: 1, kind: input, shape index: {}]
  %s2 = inlined_call_operand.vmem [shape: bf16[128,128], index: 2, kind: input, shape index: {}]
  %s3 = inlined_call_operand.vmem [shape: f32[1,128], index: 3, kind: input, shape index: {}]
  %s4 = inlined_call_operand.vmem [shape: bf16[128,128], index: 4, kind: input, shape index: {}]
  %s5 = inlined_call_operand.vmem [shape: f32[1,128], index: 5, kind: input, shape index: {}]
  %s6 = inlined_call_operand.vmem [shape: f32[256,128], index: 6, kind: output, shape index: {}]
  %s7 = sld [smem:[#allocation0]]
  $region106: #{gnn_forward.3} parent=0
    _
  %s9 = ssub.s32 1, %s7
  %s10 = scalar_select 0, %s9, %s7
  $region1: #{gnn_forward.3} parent=0
    #allocation3 [shape = 'u8[65536]{0}', space=vmem, size = 0x10000, scoped, tag = 'input window, operand 0']
    loop: start=0, step=1, limit=6
    $region2: #{gnn_forward.3} parent=1 // loop_pre_header
      _
    $region3: #{gnn_forward.3} parent=1 // loop_header
      %s12 = sphi 0, %s16
      %p13 = scmp.ge.s32.totalorder %s12, 6
      %s19 = sphi 0, %s31
      %s20 = sphi 0, %s27
      %s21 = sphi 0, %s19
      %s22 = sphi 0, %s20
      %s23 = sphi 0, %s21
      %s24 = sphi 0, %s22
      %s36 = sphi 0, %s38
      %s39 = sphi 0, %s36
      %s40 = sphi 0, %s39
      %s56 = sphi 0, %s40
      %s62 = sphi 0, %s64
      %s65 = sphi 0, %s62
      %s66 = sphi 0, %s65
      %s82 = sphi 0, %s66
      %s86 = sphi 0, %s86
      %s88 = sphi 0, %s86
      %s89 = sphi 0, %s88
      %s103 = sphi 0, %s89
      %s107 = sphi 0, %s107
      %s109 = sphi 0, %s107
      %s110 = sphi 0, %s109
      %s124 = sphi 0, %s110
      %s128 = sphi 0, %s128
      %s130 = sphi 0, %s128
      %s131 = sphi 0, %s130
      %s145 = sphi 0, %s131
      %s149 = sphi 0, %s149
      %s151 = sphi 0, %s149
      %s152 = sphi 0, %s151
      %s166 = sphi 0, %s152
      %s172 = sphi 0, %s174
      %s175 = sphi 0, %s172
      %s176 = sphi 0, %s175
      %s192 = sphi 0, %s176
    $region4: #{gnn_forward.3} parent=1 // loop_header_branch
      %15 = sbr.rel (%p13) target = $region8
    $region5: #{gnn_forward.3} parent=1 // loop_body
      %s17 = ssub.s32 %s12, 1
      %s18 = ssub.s32 %s12, 2
      %s25 = sadd.s32 1, %s20
      %p26 = scmp.ge.s32.totalorder %s25, 2
      %s27 = scalar_select %p26, 0, %s25
      %s28 = sadd.s32 1, %s19
      %s29 = scalar_select %p26, %s28, %s19
      %p30 = scmp.ge.s32.totalorder %s29, 2
      %s31 = scalar_select %p30, 0, %s29
      %s32 = ssub.s32 %s19, %s31
      %s33 = ssub.s32 %s20, %s27
      %s34 = sor.u32 %s32, %s33
      %p35 = scmp.eq.s32.totalorder %s34, 0
      %s37 = sadd.s32 %s36, 1
      %s38 = scalar_select %p35, %s36, %s37
      %p41 = pneg %p35
      %p42 = scmp.eq.s32.totalorder %s12, 3
      %p43 = por %p41, %p42
      %p44 = scmp.ne.s32.totalorder %s36, %s39
      %p45 = scmp.eq.s32.totalorder %s12, 0
      %p46 = por %p44, %p45
      %p47 = scmp.ne.s32.totalorder %s36, %s39
      %p48 = scmp.eq.s32.totalorder %s17, 3
      %p49 = por %p47, %p48
      %p50 = scmp.ne.s32.totalorder %s39, %s40
      %p51 = scmp.eq.s32.totalorder %s17, 0
      %p52 = por %p50, %p51
      %p53 = scmp.ne.s32.totalorder %s39, %s40
      %p54 = scmp.eq.s32.totalorder %s18, 3
      %p55 = por %p53, %p54
      %p57 = scmp.ne.s32.totalorder %s40, %s56
      %p58 = scmp.eq.s32.totalorder %s18, 0
      %p59 = por %p57, %p58
      %s60 = ssub.s32 %s20, %s27
      %p61 = scmp.eq.s32.totalorder %s60, 0
      %s63 = sadd.s32 %s62, 1
      %s64 = scalar_select %p61, %s62, %s63
      %p67 = pneg %p61
      %p68 = scmp.eq.s32.totalorder %s12, 3
      %p69 = por %p67, %p68
      %p70 = scmp.ne.s32.totalorder %s62, %s65
      %p71 = scmp.eq.s32.totalorder %s12, 0
      %p72 = por %p70, %p71
      %p73 = scmp.ne.s32.totalorder %s62, %s65
      %p74 = scmp.eq.s32.totalorder %s17, 3
      %p75 = por %p73, %p74
      %p76 = scmp.ne.s32.totalorder %s65, %s66
      %p77 = scmp.eq.s32.totalorder %s17, 0
      %p78 = por %p76, %p77
      %p79 = scmp.ne.s32.totalorder %s65, %s66
      %p80 = scmp.eq.s32.totalorder %s18, 3
      %p81 = por %p79, %p80
      %p83 = scmp.ne.s32.totalorder %s66, %s82
      %p84 = scmp.eq.s32.totalorder %s18, 0
      %p85 = por %p83, %p84
      %s87 = sadd.s32 %s86, 1
      %p90 = scmp.eq.s32.totalorder %s12, 3
      %p91 = scmp.ne.s32.totalorder %s86, %s88
      %p92 = scmp.eq.s32.totalorder %s12, 0
      %p93 = por %p91, %p92
      %p94 = scmp.ne.s32.totalorder %s86, %s88
      %p95 = scmp.eq.s32.totalorder %s17, 3
      %p96 = por %p94, %p95
      %p97 = scmp.ne.s32.totalorder %s88, %s89
      %p98 = scmp.eq.s32.totalorder %s17, 0
      %p99 = por %p97, %p98
      %p100 = scmp.ne.s32.totalorder %s88, %s89
      %p101 = scmp.eq.s32.totalorder %s18, 3
      %p102 = por %p100, %p101
      %p104 = scmp.ne.s32.totalorder %s89, %s103
      %p105 = scmp.eq.s32.totalorder %s18, 0
      %p106 = por %p104, %p105
      %s108 = sadd.s32 %s107, 1
      %p111 = scmp.eq.s32.totalorder %s12, 3
      %p112 = scmp.ne.s32.totalorder %s107, %s109
      %p113 = scmp.eq.s32.totalorder %s12, 0
      %p114 = por %p112, %p113
      %p115 = scmp.ne.s32.totalorder %s107, %s109
      %p116 = scmp.eq.s32.totalorder %s17, 3
      %p117 = por %p115, %p116
      %p118 = scmp.ne.s32.totalorder %s109, %s110
      %p119 = scmp.eq.s32.totalorder %s17, 0
      %p120 = por %p118, %p119
      %p121 = scmp.ne.s32.totalorder %s109, %s110
      %p122 = scmp.eq.s32.totalorder %s18, 3
      %p123 = por %p121, %p122
      %p125 = scmp.ne.s32.totalorder %s110, %s124
      %p126 = scmp.eq.s32.totalorder %s18, 0
      %p127 = por %p125, %p126
      %s129 = sadd.s32 %s128, 1
      %p132 = scmp.eq.s32.totalorder %s12, 3
      %p133 = scmp.ne.s32.totalorder %s128, %s130
      %p134 = scmp.eq.s32.totalorder %s12, 0
      %p135 = por %p133, %p134
      %p136 = scmp.ne.s32.totalorder %s128, %s130
      %p137 = scmp.eq.s32.totalorder %s17, 3
      %p138 = por %p136, %p137
      %p139 = scmp.ne.s32.totalorder %s130, %s131
      %p140 = scmp.eq.s32.totalorder %s17, 0
      %p141 = por %p139, %p140
      %p142 = scmp.ne.s32.totalorder %s130, %s131
      %p143 = scmp.eq.s32.totalorder %s18, 3
      %p144 = por %p142, %p143
      %p146 = scmp.ne.s32.totalorder %s131, %s145
      %p147 = scmp.eq.s32.totalorder %s18, 0
      %p148 = por %p146, %p147
      %s150 = sadd.s32 %s149, 1
      %p153 = scmp.eq.s32.totalorder %s12, 3
      %p154 = scmp.ne.s32.totalorder %s149, %s151
      %p155 = scmp.eq.s32.totalorder %s12, 0
      %p156 = por %p154, %p155
      %p157 = scmp.ne.s32.totalorder %s149, %s151
      %p158 = scmp.eq.s32.totalorder %s17, 3
      %p159 = por %p157, %p158
      %p160 = scmp.ne.s32.totalorder %s151, %s152
      %p161 = scmp.eq.s32.totalorder %s17, 0
      %p162 = por %p160, %p161
      %p163 = scmp.ne.s32.totalorder %s151, %s152
      %p164 = scmp.eq.s32.totalorder %s18, 3
      %p165 = por %p163, %p164
      %p167 = scmp.ne.s32.totalorder %s152, %s166
      %p168 = scmp.eq.s32.totalorder %s18, 0
      %p169 = por %p167, %p168
      %s170 = ssub.s32 %s19, %s31
      %p171 = scmp.eq.s32.totalorder %s170, 0
      %s173 = sadd.s32 %s172, 1
      %s174 = scalar_select %p171, %s172, %s173
      %p177 = pneg %p171
      %p178 = scmp.eq.s32.totalorder %s12, 3
      %p179 = por %p177, %p178
      %p180 = scmp.ne.s32.totalorder %s172, %s175
      %p181 = scmp.eq.s32.totalorder %s12, 0
      %p182 = por %p180, %p181
      %p183 = scmp.ne.s32.totalorder %s172, %s175
      %p184 = scmp.eq.s32.totalorder %s17, 3
      %p185 = por %p183, %p184
      %p186 = scmp.ne.s32.totalorder %s175, %s176
      %p187 = scmp.eq.s32.totalorder %s17, 0
      %p188 = por %p186, %p187
      %p189 = scmp.ne.s32.totalorder %s175, %s176
      %p190 = scmp.eq.s32.totalorder %s18, 3
      %p191 = por %p189, %p190
      %p193 = scmp.ne.s32.totalorder %s176, %s192
      %p194 = scmp.eq.s32.totalorder %s18, 0
      %p195 = por %p193, %p194
      %p196 = scmp.le.s32.totalorder 1, %s12
      %p197 = scmp.lt.s32.totalorder %s12, 5
      %p198 = pnand %p196, %p197
      %p199 = pneg %p198
      // Predicated region
      $region9: #{gnn_forward.3} parent=5 // pred_check
        _
      $region10: #{gnn_forward.3} parent=5 // pred_check_branch
        %201 = sbr.rel (%p198) target = $region12
      $region11: #{gnn_forward.3} parent=5 // pred_region
        %s202 = ssub.s32 %s12, 1
        // Predicated region
        $region13: #{gnn_forward.3} parent=11 // pred_check
          %p203 = pneg %p99
        $region14: #{gnn_forward.3} parent=11 // pred_check_branch
          %205 = sbr.rel (%p203) target = $region16
        $region15: #{gnn_forward.3} parent=11 // pred_region
          _
        $region16: #{gnn_forward.3} parent=11 // pred_fallthru
          _
        // Predicated region
        $region17: #{gnn_forward.3} parent=11 // pred_check
          %p206 = pneg %p120
        $region18: #{gnn_forward.3} parent=11 // pred_check_branch
          %208 = sbr.rel (%p206) target = $region20
        $region19: #{gnn_forward.3} parent=11 // pred_region
          _
        $region20: #{gnn_forward.3} parent=11 // pred_fallthru
          _
        // Predicated region
        $region21: #{gnn_forward.3} parent=11 // pred_check
          %p209 = pneg %p141
        $region22: #{gnn_forward.3} parent=11 // pred_check_branch
          %211 = sbr.rel (%p209) target = $region24
        $region23: #{gnn_forward.3} parent=11 // pred_region
          _
        $region24: #{gnn_forward.3} parent=11 // pred_fallthru
          _
        // Predicated region
        $region25: #{gnn_forward.3} parent=11 // pred_check
          %p212 = pneg %p162
        $region26: #{gnn_forward.3} parent=11 // pred_check_branch
          %214 = sbr.rel (%p212) target = $region28
        $region27: #{gnn_forward.3} parent=11 // pred_region
          _
        $region28: #{gnn_forward.3} parent=11 // pred_fallthru
          _
      $region12: #{gnn_forward.3} parent=5 // pred_fallthru
        _
      %p215 = scmp.lt.s32.totalorder %s12, 4
      // Predicated region
      $region29: #{gnn_forward.3} parent=5 // pred_check
        %p216 = pneg %p215
      $region30: #{gnn_forward.3} parent=5 // pred_check_branch
        %218 = sbr.rel (%p216) target = $region32
      $region31: #{gnn_forward.3} parent=5 // pred_region
        // Predicated region
        $region33: #{gnn_forward.3} parent=31 // pred_check
          %p219 = pneg %p46
        $region34: #{gnn_forward.3} parent=31 // pred_check_branch
          %221 = sbr.rel (%p219) target = $region36
        $region35: #{gnn_forward.3} parent=31 // pred_region
          %s222 = sand.u32 %s36, 1
          %s223 = sand.u32 %s36, 1
          %s224 = smul.addr %s223, 64
          %s225 = scalar_lea.vmem [#allocation3], %s224
          %s226 = smul.u32 16, %s19
          %s227 = smul.addr %s226, 2
          %s228 = sadd.s32 %s20, %s227
          %s229 = smul.addr %s228, 4
          %s230 = scalar_lea.vmem %s0, %s229
          // Predicated region
          $region37: #{gnn_forward.3} parent=35 // pred_check
            _
          $region38: #{gnn_forward.3} parent=35 // pred_check_branch
            %232 = sbr.rel (0) target = $region40
          $region39: #{gnn_forward.3} parent=35 // pred_region
            // Predicated region
            $region41: #{gnn_forward.3} parent=39 // pred_check
              _
            $region42: #{gnn_forward.3} parent=39 // pred_check_branch
              %234 = sbr.rel target = $region44
            $region43: #{gnn_forward.3} parent=39 // pred_region
              // Predicated region
              $region56: #{gnn_forward.3} parent=43 // pred_check
                _
              $region57: #{gnn_forward.3} parent=43 // pred_check_branch
                %280 = sbr.rel (0) target = $region59
              $region58: #{gnn_forward.3} parent=43 // pred_region
                loop: start=0, step=1, limit=1
                $region60: #{gnn_forward.3} parent=58 // loop_pre_header
                  _
                $region61: #{gnn_forward.3} parent=58 // loop_header
                  %s282 = sphi 0, %s286
                  %p283 = scmp.ge.s32.totalorder %s282, 1
                  %s287 = sphi %s230, %s230
                  %s288 = sphi %s225, %s225
                $region62: #{gnn_forward.3} parent=58 // loop_header_branch
                  %285 = sbr.rel (%p283) target = $region66
                $region63: #{gnn_forward.3} parent=58 // loop_body
                  _
                $region64: #{gnn_forward.3} parent=58 // loop_footer
                  %s286 = sadd.s32 1, %s282
                $region65: #{gnn_forward.3} parent=58 // loop_footer_branch
                  %281 = sbr.rel target = $region61
                $region66: #{gnn_forward.3} parent=58 // loop_exit
                  _
                %s290 = ssub.s32 16, 1
                loop: start=0, step=1, limit=1
                $region67: #{gnn_forward.3} parent=58 // loop_pre_header
                  _
                $region68: #{gnn_forward.3} parent=58 // loop_header
                  %s292 = sphi 0, %s296
                  %p293 = scmp.ge.s32.totalorder %s292, 1
                  %s297 = sphi %s230, %s230
                  %s298 = sphi %s225, %s225
                $region69: #{gnn_forward.3} parent=58 // loop_header_branch
                  %295 = sbr.rel (%p293) target = $region73
                $region70: #{gnn_forward.3} parent=58 // loop_body
                  %v299 = vld [vmem:[%s297] sm:%s290]
                  %300 = vst [vmem:[%s298] sm:%s290] %v299
                  %v301 = vld [vmem:[%s297 + $0x8] sm:%s290]
                  %302 = vst [vmem:[%s298 + $0x4] sm:%s290] %v301
                  %v303 = vld [vmem:[%s297 + $0x10] sm:%s290]
                  %304 = vst [vmem:[%s298 + $0x8] sm:%s290] %v303
                  %v305 = vld [vmem:[%s297 + $0x18] sm:%s290]
                  %306 = vst [vmem:[%s298 + $0xc] sm:%s290] %v305
                  %v307 = vld [vmem:[%s297 + $0x20] sm:%s290]
                  %308 = vst [vmem:[%s298 + $0x10] sm:%s290] %v307
                  %v309 = vld [vmem:[%s297 + $0x28] sm:%s290]
                  %310 = vst [vmem:[%s298 + $0x14] sm:%s290] %v309
                  %v311 = vld [vmem:[%s297 + $0x30] sm:%s290]
                  %312 = vst [vmem:[%s298 + $0x18] sm:%s290] %v311
                  %v313 = vld [vmem:[%s297 + $0x38] sm:%s290]
                  %314 = vst [vmem:[%s298 + $0x1c] sm:%s290] %v313
                  %v315 = vld [vmem:[%s297 + $0x40] sm:%s290]
                  %316 = vst [vmem:[%s298 + $0x20] sm:%s290] %v315
                  %v317 = vld [vmem:[%s297 + $0x48] sm:%s290]
                  %318 = vst [vmem:[%s298 + $0x24] sm:%s290] %v317
                  %v319 = vld [vmem:[%s297 + $0x50] sm:%s290]
                  %320 = vst [vmem:[%s298 + $0x28] sm:%s290] %v319
                  %v321 = vld [vmem:[%s297 + $0x58] sm:%s290]
                  %322 = vst [vmem:[%s298 + $0x2c] sm:%s290] %v321
                  %v323 = vld [vmem:[%s297 + $0x60] sm:%s290]
                  %324 = vst [vmem:[%s298 + $0x30] sm:%s290] %v323
                  %v325 = vld [vmem:[%s297 + $0x68] sm:%s290]
                  %326 = vst [vmem:[%s298 + $0x34] sm:%s290] %v325
                  %v327 = vld [vmem:[%s297 + $0x70] sm:%s290]
                  %328 = vst [vmem:[%s298 + $0x38] sm:%s290] %v327
                  %v329 = vld [vmem:[%s297 + $0x78] sm:%s290]
                  %330 = vst [vmem:[%s298 + $0x3c] sm:%s290] %v329
                $region71: #{gnn_forward.3} parent=58 // loop_footer
                  %s296 = sadd.s32 1, %s292
                $region72: #{gnn_forward.3} parent=58 // loop_footer_branch
                  %291 = sbr.rel target = $region68
                $region73: #{gnn_forward.3} parent=58 // loop_exit
                  _
              $region59: #{gnn_forward.3} parent=43 // pred_fallthru
                _
            $region44: #{gnn_forward.3} parent=39 // pred_fallthru
              _
            // Predicated region
            $region45: #{gnn_forward.3} parent=39 // pred_check
              _
            $region46: #{gnn_forward.3} parent=39 // pred_check_branch
              %236 = sbr.rel (0) target = $region48
            $region47: #{gnn_forward.3} parent=39 // pred_region
              %s238 = ssub.s32 16, 1
              loop: start=0, step=1, limit=1
              $region49: #{gnn_forward.3} parent=47 // loop_pre_header
                _
              $region50: #{gnn_forward.3} parent=47 // loop_header
                %s240 = sphi 0, %s244
                %p241 = scmp.ge.s32.totalorder %s240, 1
                %s245 = sphi %s230, %s230
                %s246 = sphi %s225, %s225
              $region51: #{gnn_forward.3} parent=47 // loop_header_branch
                %243 = sbr.rel (%p241) target = $region55
              $region52: #{gnn_forward.3} parent=47 // loop_body
                %v247 = vld [vmem:[%s245] sm:%s238]
                %248 = vst [vmem:[%s246] sm:%s238] %v247
                %v249 = vld [vmem:[%s245 + $0x8] sm:%s238]
                %250 = vst [vmem:[%s246 + $0x4] sm:%s238] %v249
                %v251 = vld [vmem:[%s245 + $0x10] sm:%s238]
                %252 = vst [vmem:[%s246 + $0x8] sm:%s238] %v251
                %v253 = vld [vmem:[%s245 + $0x18] sm:%s238]
                %254 = vst [vmem:[%s246 + $0xc] sm:%s238] %v253
                %v255 = vld [vmem:[%s245 + $0x20] sm:%s238]
                %256 = vst [vmem:[%s246 + $0x10] sm:%s238] %v255
                %v257 = vld [vmem:[%s245 + $0x28] sm:%s238]
                %258 = vst [vmem:[%s246 + $0x14] sm:%s238] %v257
                %v259 = vld [vmem:[%s245 + $0x30] sm:%s238]
                %260 = vst [vmem:[%s246 + $0x18] sm:%s238] %v259
                %v261 = vld [vmem:[%s245 + $0x38] sm:%s238]
                %262 = vst [vmem:[%s246 + $0x1c] sm:%s238] %v261
                %v263 = vld [vmem:[%s245 + $0x40] sm:%s238]
                %264 = vst [vmem:[%s246 + $0x20] sm:%s238] %v263
                %v265 = vld [vmem:[%s245 + $0x48] sm:%s238]
                %266 = vst [vmem:[%s246 + $0x24] sm:%s238] %v265
                %v267 = vld [vmem:[%s245 + $0x50] sm:%s238]
                %268 = vst [vmem:[%s246 + $0x28] sm:%s238] %v267
                %v269 = vld [vmem:[%s245 + $0x58] sm:%s238]
                %270 = vst [vmem:[%s246 + $0x2c] sm:%s238] %v269
                %v271 = vld [vmem:[%s245 + $0x60] sm:%s238]
                %272 = vst [vmem:[%s246 + $0x30] sm:%s238] %v271
                %v273 = vld [vmem:[%s245 + $0x68] sm:%s238]
                %274 = vst [vmem:[%s246 + $0x34] sm:%s238] %v273
                %v275 = vld [vmem:[%s245 + $0x70] sm:%s238]
                %276 = vst [vmem:[%s246 + $0x38] sm:%s238] %v275
                %v277 = vld [vmem:[%s245 + $0x78] sm:%s238]
                %278 = vst [vmem:[%s246 + $0x3c] sm:%s238] %v277
              $region53: #{gnn_forward.3} parent=47 // loop_footer
                %s244 = sadd.s32 1, %s240
              $region54: #{gnn_forward.3} parent=47 // loop_footer_branch
                %239 = sbr.rel target = $region50
              $region55: #{gnn_forward.3} parent=47 // loop_exit
                _
            $region48: #{gnn_forward.3} parent=39 // pred_fallthru
              _
          $region40: #{gnn_forward.3} parent=35 // pred_fallthru
            _
          %331 = vnop
        $region36: #{gnn_forward.3} parent=31 // pred_fallthru
          _
        // Predicated region
        $region74: #{gnn_forward.3} parent=31 // pred_check
          %p332 = pneg %p72
        $region75: #{gnn_forward.3} parent=31 // pred_check_branch
          %334 = sbr.rel (%p332) target = $region77
        $region76: #{gnn_forward.3} parent=31 // pred_region
          %s335 = smul.u32 16, %s20
          %p336 = scmp.lt.s32.totalorder %s335, 31
          %s337 = scalar_select %p336, %s335, 31
          %s338 = smul.addr %s337, 4
          %s339 = scalar_lea.vmem %s1, %s338
          %s340 = smul.u32 16, %s20
        $region77: #{gnn_forward.3} parent=31 // pred_fallthru
          _
      $region32: #{gnn_forward.3} parent=5 // pred_fallthru
        _
      %p341 = scmp.le.s32.totalorder 1, %s12
      %p342 = scmp.lt.s32.totalorder %s12, 5
      %p343 = pnand %p341, %p342
      %p344 = pneg %p343
      // Predicated region
      $region78: #{gnn_forward.3} parent=5 // pred_check
        _
      $region79: #{gnn_forward.3} parent=5 // pred_check_branch
        %346 = sbr.rel (%p343) target = $region81
      $region80: #{gnn_forward.3} parent=5 // pred_region
        %s347 = ssub.s32 %s12, 1
        %s348 = sand.u32 %s39, 1
        %s349 = sand.u32 %s39, 1
        %s350 = smul.addr %s349, 64
        %s351 = scalar_lea.vmem [#allocation3], %s350
        // Predicated region
        $region82: #{gnn_forward.3} parent=80 // pred_check
          %p352 = pneg %p52
        $region83: #{gnn_forward.3} parent=80 // pred_check_branch
          %354 = sbr.rel (%p352) target = $region85
        $region84: #{gnn_forward.3} parent=80 // pred_region
          _
        $region85: #{gnn_forward.3} parent=80 // pred_fallthru
          _
        %s355 = sand.u32 %s39, 1
        %s356 = sand.u32 %s39, 1
        %s357 = smul.addr %s356, 64
        %s358 = scalar_lea.vmem [#allocation3], %s357
        %p359 = pneg %p52
        %p360 = pneg %p49
        %s361 = smul.u32 16, %s22
        %p362 = scmp.lt.s32.totalorder %s361, 31
        %s363 = scalar_select %p362, %s361, 31
        %s364 = smul.addr %s363, 4
        %s365 = scalar_lea.vmem %s1, %s364
        %p366 = pneg %p78
        %p367 = pneg %p75
        %p368 = pneg %p99
        %p369 = pneg %p96
        %p370 = pneg %p120
        %p371 = pneg %p117
        %p372 = pneg %p141
        %p373 = pneg %p138
        %p374 = pneg %p162
        %p375 = pneg %p159
        %p376 = pneg %p188
        %p377 = pneg %p185
        %s378 = smul.u32 16, %s21
        %p379 = scmp.lt.s32.totalorder %s378, 31
        %s380 = scalar_select %p379, %s378, 31
        %s381 = smul.addr %s380, 8
        %s382 = scalar_lea.vmem %s6, %s381
        %s383 = smul.u32 16, %s21
        %s384 = smul.u32 16, %s22
        %p385 = scmp.lt.s32.totalorder %s384, 31
        %s386 = scalar_select %p385, %s384, 31
        %s387 = smul.addr %s386, 4
        %s388 = scalar_lea.vmem %s1, %s387
        %s389 = smul.u32 16, %s22
        %s390 = smul.u32 16, %s21
        %p391 = scmp.lt.s32.totalorder %s390, 31
        %s392 = scalar_select %p391, %s390, 31
        %s393 = smul.addr %s392, 8
        %s394 = scalar_lea.vmem %s6, %s393
        %s395 = smul.u32 16, %s21
        %p396 = scmp.eq.s32.totalorder %s22, 0
        // Predicated region
        $region86: #{gnn_forward.3} parent=80 // pred_check
          %p397 = pneg %p396
        $region87: #{gnn_forward.3} parent=80 // pred_check_branch
          %399 = sbr.rel (%p397) target = $region89
        $region88: #{gnn_forward.3} parent=80 // pred_region
          %400 = vst [vmem:[#allocation2] sm:$0xff] 0.0
          %401 = vst [vmem:[#allocation2 + $0x8] sm:$0xff] 0.0
          %402 = vst [vmem:[#allocation2 + $0x10] sm:$0xff] 0.0
          %403 = vst [vmem:[#allocation2 + $0x18] sm:$0xff] 0.0
          %404 = vst [vmem:[#allocation2 + $0x20] sm:$0xff] 0.0
          %405 = vst [vmem:[#allocation2 + $0x28] sm:$0xff] 0.0
          %406 = vst [vmem:[#allocation2 + $0x30] sm:$0xff] 0.0
          %407 = vst [vmem:[#allocation2 + $0x38] sm:$0xff] 0.0
          %408 = vst [vmem:[#allocation2 + $0x40] sm:$0xff] 0.0
          %409 = vst [vmem:[#allocation2 + $0x48] sm:$0xff] 0.0
          %410 = vst [vmem:[#allocation2 + $0x50] sm:$0xff] 0.0
          %411 = vst [vmem:[#allocation2 + $0x58] sm:$0xff] 0.0
          %412 = vst [vmem:[#allocation2 + $0x60] sm:$0xff] 0.0
          %413 = vst [vmem:[#allocation2 + $0x68] sm:$0xff] 0.0
          %414 = vst [vmem:[#allocation2 + $0x70] sm:$0xff] 0.0
          %415 = vst [vmem:[#allocation2 + $0x78] sm:$0xff] 0.0
        $region89: #{gnn_forward.3} parent=80 // pred_fallthru
          _
        %v416 = vld [vmem:[#allocation2] sm:$0xff]
        %v417 = vld [vmem:[#allocation2 + $0x8] sm:$0xff]
        %v418 = vld [vmem:[#allocation2 + $0x10] sm:$0xff]
        %v419 = vld [vmem:[#allocation2 + $0x18] sm:$0xff]
        %v420 = vld [vmem:[#allocation2 + $0x20] sm:$0xff]
        %v421 = vld [vmem:[#allocation2 + $0x28] sm:$0xff]
        %v422 = vld [vmem:[#allocation2 + $0x30] sm:$0xff]
        %v423 = vld [vmem:[#allocation2 + $0x38] sm:$0xff]
        %v424 = vld [vmem:[#allocation2 + $0x40] sm:$0xff]
        %v425 = vld [vmem:[#allocation2 + $0x48] sm:$0xff]
        %v426 = vld [vmem:[#allocation2 + $0x50] sm:$0xff]
        %v427 = vld [vmem:[#allocation2 + $0x58] sm:$0xff]
        %v428 = vld [vmem:[#allocation2 + $0x60] sm:$0xff]
        %v429 = vld [vmem:[#allocation2 + $0x68] sm:$0xff]
        %v430 = vld [vmem:[#allocation2 + $0x70] sm:$0xff]
        %v431 = vld [vmem:[#allocation2 + $0x78] sm:$0xff]
        %v432 = vld [vmem:[%s351] sm:$0xf]
        %v433 = vld [vmem:[%s351 + $0x4] sm:$0xf]
        %v434 = vld [vmem:[%s351 + $0x8] sm:$0xf]
        %v435 = vld [vmem:[%s351 + $0xc] sm:$0xf]
        %v436 = vld [vmem:[%s351 + $0x10] sm:$0xf]
        %v437 = vld [vmem:[%s351 + $0x14] sm:$0xf]
        %v438 = vld [vmem:[%s351 + $0x18] sm:$0xf]
        %v439 = vld [vmem:[%s351 + $0x1c] sm:$0xf]
        %v440 = vld [vmem:[%s351 + $0x20] sm:$0xf]
        %v441 = vld [vmem:[%s351 + $0x24] sm:$0xf]
        %v442 = vld [vmem:[%s351 + $0x28] sm:$0xf]
        %v443 = vld [vmem:[%s351 + $0x2c] sm:$0xf]
        %v444 = vld [vmem:[%s351 + $0x30] sm:$0xf]
        %v445 = vld [vmem:[%s351 + $0x34] sm:$0xf]
        %v446 = vld [vmem:[%s351 + $0x38] sm:$0xf]
        %v447 = vld [vmem:[%s351 + $0x3c] sm:$0xf]
        %v448 = vld [vmem:[%s388] sm:$0xf]
        %v449 = vld [vmem:[%s388 + $0x4] sm:$0xf]
        %v450 = vld [vmem:[%s388 + $0x8] sm:$0xf]
        %v451 = vld [vmem:[%s388 + $0xc] sm:$0xf]
        %v452 = vld [vmem:[%s388 + $0x10] sm:$0xf]
        %v453 = vld [vmem:[%s388 + $0x14] sm:$0xf]
        %v454 = vld [vmem:[%s388 + $0x18] sm:$0xf]
        %v455 = vld [vmem:[%s388 + $0x1c] sm:$0xf]
        %v456 = vld [vmem:[%s388 + $0x20] sm:$0xf]
        %v457 = vld [vmem:[%s388 + $0x24] sm:$0xf]
        %v458 = vld [vmem:[%s388 + $0x28] sm:$0xf]
        %v459 = vld [vmem:[%s388 + $0x2c] sm:$0xf]
        %v460 = vld [vmem:[%s388 + $0x30] sm:$0xf]
        %v461 = vld [vmem:[%s388 + $0x34] sm:$0xf]
        %v462 = vld [vmem:[%s388 + $0x38] sm:$0xf]
        %v463 = vld [vmem:[%s388 + $0x3c] sm:$0xf]
        %v480 = vunpack.c.l.b16 %v432
        %v481 = vunpack.c.l.b16 %v433
        %v482 = vunpack.c.l.b16 %v434
        %v483 = vunpack.c.l.b16 %v435
        %v484 = vunpack.c.l.b16 %v436
        %v485 = vunpack.c.l.b16 %v437
        %v486 = vunpack.c.l.b16 %v438
        %v487 = vunpack.c.l.b16 %v439
        %v488 = vunpack.c.l.b16 %v440
        %v489 = vunpack.c.l.b16 %v441
        %v490 = vunpack.c.l.b16 %v442
        %v491 = vunpack.c.l.b16 %v443
        %v492 = vunpack.c.l.b16 %v444
        %v493 = vunpack.c.l.b16 %v445
        %v494 = vunpack.c.l.b16 %v446
        %v495 = vunpack.c.l.b16 %v447
        %v496 = vpack.c.b16 %v481, %v480
        %v497 = vpack.c.b16 %v483, %v482
        %v498 = vpack.c.b16 %v485, %v484
        %v499 = vpack.c.b16 %v487, %v486
        %v500 = vpack.c.b16 %v489, %v488
        %v501 = vpack.c.b16 %v491, %v490
        %v502 = vpack.c.b16 %v493, %v492
        %v503 = vpack.c.b16 %v495, %v494
        %v528 = vunpack.c.l.b16 %v448
        %v529 = vunpack.c.l.b16 %v449
        %v530 = vunpack.c.l.b16 %v450
        %v531 = vunpack.c.l.b16 %v451
        %v532 = vunpack.c.l.b16 %v452
        %v533 = vunpack.c.l.b16 %v453
        %v534 = vunpack.c.l.b16 %v454
        %v535 = vunpack.c.l.b16 %v455
        %v536 = vunpack.c.l.b16 %v456
        %v537 = vunpack.c.l.b16 %v457
        %v538 = vunpack.c.l.b16 %v458
        %v539 = vunpack.c.l.b16 %v459
        %v540 = vunpack.c.l.b16 %v460
        %v541 = vunpack.c.l.b16 %v461
        %v542 = vunpack.c.l.b16 %v462
        %v543 = vunpack.c.l.b16 %v463
        %v544 = vpack.c.b16 %v529, %v528
        %v545 = vpack.c.b16 %v531, %v530
        %v546 = vpack.c.b16 %v533, %v532
        %v547 = vpack.c.b16 %v535, %v534
        %v548 = vpack.c.b16 %v537, %v536
        %v549 = vpack.c.b16 %v539, %v538
        %v550 = vpack.c.b16 %v541, %v540
        %v551 = vpack.c.b16 %v543, %v542
        %560 = vmatpush.bf16.msra.mxu0 %v551
        %561 = vmatpush.bf16.msra.mxu0 %v550
        %562 = vmatpush.bf16.msra.mxu0 %v549
        %563 = vmatpush.bf16.msra.mxu0 %v548
        %564 = vmatpush.bf16.msra.mxu0 %v547
        %565 = vmatpush.bf16.msra.mxu0 %v546
        %566 = vmatpush.bf16.msra.mxu0 %v545
        %567 = vmatpush.bf16.msra.mxu0 %v544
        %568 = vmatmul.bf16.gmra.mxu0 %v496
        %v569 = vpop.f32.mrf.mxu0
        %v570 = vadd.f32 0.0, %v569
        %v571 = vpop.f32.mrf.mxu0
        %v572 = vadd.f32 0.0, %v571
        %573 = vmatmul.bf16.gmra.mxu0 %v497
        %v574 = vpop.f32.mrf.mxu0
        %v575 = vadd.f32 0.0, %v574
        %v576 = vpop.f32.mrf.mxu0
        %v577 = vadd.f32 0.0, %v576
        %578 = vmatmul.bf16.gmra.mxu0 %v498
        %v579 = vpop.f32.mrf.mxu0
        %v580 = vadd.f32 0.0, %v579
        %v581 = vpop.f32.mrf.mxu0
        %v582 = vadd.f32 0.0, %v581
        %583 = vmatmul.bf16.gmra.mxu0 %v499
        %v584 = vpop.f32.mrf.mxu0
        %v585 = vadd.f32 0.0, %v584
        %v586 = vpop.f32.mrf.mxu0
        %v587 = vadd.f32 0.0, %v586
        %588 = vmatmul.bf16.gmra.mxu0 %v500
        %v589 = vpop.f32.mrf.mxu0
        %v590 = vadd.f32 0.0, %v589
        %v591 = vpop.f32.mrf.mxu0
        %v592 = vadd.f32 0.0, %v591
        %593 = vmatmul.bf16.gmra.mxu0 %v501
        %v594 = vpop.f32.mrf.mxu0
        %v595 = vadd.f32 0.0, %v594
        %v596 = vpop.f32.mrf.mxu0
        %v597 = vadd.f32 0.0, %v596
        %598 = vmatmul.bf16.gmra.mxu0 %v502
        %v599 = vpop.f32.mrf.mxu0
        %v600 = vadd.f32 0.0, %v599
        %v601 = vpop.f32.mrf.mxu0
        %v602 = vadd.f32 0.0, %v601
        %603 = vmatmul.bf16.gmra.mxu0 %v503
        %v604 = vpop.f32.mrf.mxu0
        %v605 = vadd.f32 0.0, %v604
        %v606 = vpop.f32.mrf.mxu0
        %v607 = vadd.f32 0.0, %v606
        %608 = vdwg.mxu0
        %v609 = vadd.f32 %v416, %v570
        %v610 = vadd.f32 %v417, %v572
        %v611 = vadd.f32 %v418, %v575
        %v612 = vadd.f32 %v419, %v577
        %v613 = vadd.f32 %v420, %v580
        %v614 = vadd.f32 %v421, %v582
        %v615 = vadd.f32 %v422, %v585
        %v616 = vadd.f32 %v423, %v587
        %v617 = vadd.f32 %v424, %v590
        %v618 = vadd.f32 %v425, %v592
        %v619 = vadd.f32 %v426, %v595
        %v620 = vadd.f32 %v427, %v597
        %v621 = vadd.f32 %v428, %v600
        %v622 = vadd.f32 %v429, %v602
        %v623 = vadd.f32 %v430, %v605
        %v624 = vadd.f32 %v431, %v607
        %625 = vst [vmem:[#allocation2] sm:$0xff] %v609
        %626 = vst [vmem:[#allocation2 + $0x8] sm:$0xff] %v610
        %627 = vst [vmem:[#allocation2 + $0x10] sm:$0xff] %v611
        %628 = vst [vmem:[#allocation2 + $0x18] sm:$0xff] %v612
        %629 = vst [vmem:[#allocation2 + $0x20] sm:$0xff] %v613
        %630 = vst [vmem:[#allocation2 + $0x28] sm:$0xff] %v614
        %631 = vst [vmem:[#allocation2 + $0x30] sm:$0xff] %v615
        %632 = vst [vmem:[#allocation2 + $0x38] sm:$0xff] %v616
        %633 = vst [vmem:[#allocation2 + $0x40] sm:$0xff] %v617
        %634 = vst [vmem:[#allocation2 + $0x48] sm:$0xff] %v618
        %635 = vst [vmem:[#allocation2 + $0x50] sm:$0xff] %v619
        %636 = vst [vmem:[#allocation2 + $0x58] sm:$0xff] %v620
        %637 = vst [vmem:[#allocation2 + $0x60] sm:$0xff] %v621
        %638 = vst [vmem:[#allocation2 + $0x68] sm:$0xff] %v622
        %639 = vst [vmem:[#allocation2 + $0x70] sm:$0xff] %v623
        %640 = vst [vmem:[#allocation2 + $0x78] sm:$0xff] %v624
        %p641 = scmp.eq.s32.totalorder %s22, 1
        // Predicated region
        $region90: #{gnn_forward.3} parent=80 // pred_check
          %p642 = pneg %p641
        $region91: #{gnn_forward.3} parent=80 // pred_check_branch
          %644 = sbr.rel (%p642) target = $region93
        $region92: #{gnn_forward.3} parent=80 // pred_region
          %v645 = vld [vmem:[#allocation2] sm:$0xff]
          %v646 = vld [vmem:[#allocation2 + $0x8] sm:$0xff]
          %v647 = vld [vmem:[#allocation2 + $0x10] sm:$0xff]
          %v648 = vld [vmem:[#allocation2 + $0x18] sm:$0xff]
          %v649 = vld [vmem:[#allocation2 + $0x20] sm:$0xff]
          %v650 = vld [vmem:[#allocation2 + $0x28] sm:$0xff]
          %v651 = vld [vmem:[#allocation2 + $0x30] sm:$0xff]
          %v652 = vld [vmem:[#allocation2 + $0x38] sm:$0xff]
          %v653 = vld [vmem:[#allocation2 + $0x40] sm:$0xff]
          %v654 = vld [vmem:[#allocation2 + $0x48] sm:$0xff]
          %v655 = vld [vmem:[#allocation2 + $0x50] sm:$0xff]
          %v656 = vld [vmem:[#allocation2 + $0x58] sm:$0xff]
          %v657 = vld [vmem:[#allocation2 + $0x60] sm:$0xff]
          %v658 = vld [vmem:[#allocation2 + $0x68] sm:$0xff]
          %v659 = vld [vmem:[#allocation2 + $0x70] sm:$0xff]
          %v660 = vld [vmem:[#allocation2 + $0x78] sm:$0xff]
          %v661 = vpack.c.bf16 %v646, %v645
          %v662 = vpack.c.bf16 %v648, %v647
          %v663 = vpack.c.bf16 %v650, %v649
          %v664 = vpack.c.bf16 %v652, %v651
          %v665 = vpack.c.bf16 %v654, %v653
          %v666 = vpack.c.bf16 %v656, %v655
          %v667 = vpack.c.bf16 %v658, %v657
          %v668 = vpack.c.bf16 %v660, %v659
          %v669 = vld [vmem:[%s2] sm:$0xf]
          %v670 = vld [vmem:[%s2 + $0x4] sm:$0xf]
          %v671 = vld [vmem:[%s2 + $0x8] sm:$0xf]
          %v672 = vld [vmem:[%s2 + $0xc] sm:$0xf]
          %v673 = vld [vmem:[%s2 + $0x10] sm:$0xf]
          %v674 = vld [vmem:[%s2 + $0x14] sm:$0xf]
          %v675 = vld [vmem:[%s2 + $0x18] sm:$0xf]
          %v676 = vld [vmem:[%s2 + $0x1c] sm:$0xf]
          %v677 = vld [vmem:[%s2 + $0x20] sm:$0xf]
          %v678 = vld [vmem:[%s2 + $0x24] sm:$0xf]
          %v679 = vld [vmem:[%s2 + $0x28] sm:$0xf]
          %v680 = vld [vmem:[%s2 + $0x2c] sm:$0xf]
          %v681 = vld [vmem:[%s2 + $0x30] sm:$0xf]
          %v682 = vld [vmem:[%s2 + $0x34] sm:$0xf]
          %v683 = vld [vmem:[%s2 + $0x38] sm:$0xf]
          %v684 = vld [vmem:[%s2 + $0x3c] sm:$0xf]
          %v685 = vld [vmem:[%s3] sm:$0x1]
          %v687 = vperm.slane %v685, 0
          %v705 = vunpack.c.l.b16 %v669
          %v706 = vunpack.c.l.b16 %v670
          %v707 = vunpack.c.l.b16 %v671
          %v708 = vunpack.c.l.b16 %v672
          %v709 = vunpack.c.l.b16 %v673
          %v710 = vunpack.c.l.b16 %v674
          %v711 = vunpack.c.l.b16 %v675
          %v712 = vunpack.c.l.b16 %v676
          %v713 = vunpack.c.l.b16 %v677
          %v714 = vunpack.c.l.b16 %v678
          %v715 = vunpack.c.l.b16 %v679
          %v716 = vunpack.c.l.b16 %v680
          %v717 = vunpack.c.l.b16 %v681
          %v718 = vunpack.c.l.b16 %v682
          %v719 = vunpack.c.l.b16 %v683
          %v720 = vunpack.c.l.b16 %v684
          %v721 = vpack.c.b16 %v706, %v705
          %v722 = vpack.c.b16 %v708, %v707
          %v723 = vpack.c.b16 %v710, %v709
          %v724 = vpack.c.b16 %v712, %v711
          %v725 = vpack.c.b16 %v714, %v713
          %v726 = vpack.c.b16 %v716, %v715
          %v727 = vpack.c.b16 %v718, %v717
          %v728 = vpack.c.b16 %v720, %v719
          %737 = vmatpush.bf16.msra.mxu0 %v728
          %738 = vmatpush.bf16.msra.mxu0 %v727
          %739 = vmatpush.bf16.msra.mxu0 %v726
          %740 = vmatpush.bf16.msra.mxu0 %v725
          %741 = vmatpush.bf16.msra.mxu0 %v724
          %742 = vmatpush.bf16.msra.mxu0 %v723
          %743 = vmatpush.bf16.msra.mxu0 %v722
          %744 = vmatpush.bf16.msra.mxu0 %v721
          %745 = vmatmul.bf16.gmra.mxu0 %v661
          %v746 = vpop.f32.mrf.mxu0
          %v747 = vadd.f32 %v687, %v746
          %v748 = vpop.f32.mrf.mxu0
          %v749 = vadd.f32 %v687, %v748
          %750 = vmatmul.bf16.gmra.mxu0 %v662
          %v751 = vpop.f32.mrf.mxu0
          %v752 = vadd.f32 %v687, %v751
          %v753 = vpop.f32.mrf.mxu0
          %v754 = vadd.f32 %v687, %v753
          %755 = vmatmul.bf16.gmra.mxu0 %v663
          %v756 = vpop.f32.mrf.mxu0
          %v757 = vadd.f32 %v687, %v756
          %v758 = vpop.f32.mrf.mxu0
          %v759 = vadd.f32 %v687, %v758
          %760 = vmatmul.bf16.gmra.mxu0 %v664
          %v761 = vpop.f32.mrf.mxu0
          %v762 = vadd.f32 %v687, %v761
          %v763 = vpop.f32.mrf.mxu0
          %v764 = vadd.f32 %v687, %v763
          %765 = vmatmul.bf16.gmra.mxu0 %v665
          %v766 = vpop.f32.mrf.mxu0
          %v767 = vadd.f32 %v687, %v766
          %v768 = vpop.f32.mrf.mxu0
          %v769 = vadd.f32 %v687, %v768
          %770 = vmatmul.bf16.gmra.mxu0 %v666
          %v771 = vpop.f32.mrf.mxu0
          %v772 = vadd.f32 %v687, %v771
          %v773 = vpop.f32.mrf.mxu0
          %v774 = vadd.f32 %v687, %v773
          %775 = vmatmul.bf16.gmra.mxu0 %v667
          %v776 = vpop.f32.mrf.mxu0
          %v777 = vadd.f32 %v687, %v776
          %v778 = vpop.f32.mrf.mxu0
          %v779 = vadd.f32 %v687, %v778
          %780 = vmatmul.bf16.gmra.mxu0 %v668
          %v781 = vpop.f32.mrf.mxu0
          %v782 = vadd.f32 %v687, %v781
          %v783 = vpop.f32.mrf.mxu0
          %v784 = vadd.f32 %v687, %v783
          %785 = vdwg.mxu0
          %v786 = vmax.f32 %v747, 0.0
          %v787 = vmax.f32 %v749, 0.0
          %v788 = vmax.f32 %v752, 0.0
          %v789 = vmax.f32 %v754, 0.0
          %v790 = vmax.f32 %v757, 0.0
          %v791 = vmax.f32 %v759, 0.0
          %v792 = vmax.f32 %v762, 0.0
          %v793 = vmax.f32 %v764, 0.0
          %v794 = vmax.f32 %v767, 0.0
          %v795 = vmax.f32 %v769, 0.0
          %v796 = vmax.f32 %v772, 0.0
          %v797 = vmax.f32 %v774, 0.0
          %v798 = vmax.f32 %v777, 0.0
          %v799 = vmax.f32 %v779, 0.0
          %v800 = vmax.f32 %v782, 0.0
          %v801 = vmax.f32 %v784, 0.0
          %v802 = vpack.c.bf16 %v787, %v786
          %v803 = vpack.c.bf16 %v789, %v788
          %v804 = vpack.c.bf16 %v791, %v790
          %v805 = vpack.c.bf16 %v793, %v792
          %v806 = vpack.c.bf16 %v795, %v794
          %v807 = vpack.c.bf16 %v797, %v796
          %v808 = vpack.c.bf16 %v799, %v798
          %v809 = vpack.c.bf16 %v801, %v800
          %v810 = vld [vmem:[%s4] sm:$0xf]
          %v811 = vld [vmem:[%s4 + $0x4] sm:$0xf]
          %v812 = vld [vmem:[%s4 + $0x8] sm:$0xf]
          %v813 = vld [vmem:[%s4 + $0xc] sm:$0xf]
          %v814 = vld [vmem:[%s4 + $0x10] sm:$0xf]
          %v815 = vld [vmem:[%s4 + $0x14] sm:$0xf]
          %v816 = vld [vmem:[%s4 + $0x18] sm:$0xf]
          %v817 = vld [vmem:[%s4 + $0x1c] sm:$0xf]
          %v818 = vld [vmem:[%s4 + $0x20] sm:$0xf]
          %v819 = vld [vmem:[%s4 + $0x24] sm:$0xf]
          %v820 = vld [vmem:[%s4 + $0x28] sm:$0xf]
          %v821 = vld [vmem:[%s4 + $0x2c] sm:$0xf]
          %v822 = vld [vmem:[%s4 + $0x30] sm:$0xf]
          %v823 = vld [vmem:[%s4 + $0x34] sm:$0xf]
          %v824 = vld [vmem:[%s4 + $0x38] sm:$0xf]
          %v825 = vld [vmem:[%s4 + $0x3c] sm:$0xf]
          %v826 = vld [vmem:[%s5] sm:$0x1]
          %v828 = vperm.slane %v826, 0
          %v846 = vunpack.c.l.b16 %v810
          %v847 = vunpack.c.l.b16 %v811
          %v848 = vunpack.c.l.b16 %v812
          %v849 = vunpack.c.l.b16 %v813
          %v850 = vunpack.c.l.b16 %v814
          %v851 = vunpack.c.l.b16 %v815
          %v852 = vunpack.c.l.b16 %v816
          %v853 = vunpack.c.l.b16 %v817
          %v854 = vunpack.c.l.b16 %v818
          %v855 = vunpack.c.l.b16 %v819
          %v856 = vunpack.c.l.b16 %v820
          %v857 = vunpack.c.l.b16 %v821
          %v858 = vunpack.c.l.b16 %v822
          %v859 = vunpack.c.l.b16 %v823
          %v860 = vunpack.c.l.b16 %v824
          %v861 = vunpack.c.l.b16 %v825
          %v862 = vpack.c.b16 %v847, %v846
          %v863 = vpack.c.b16 %v849, %v848
          %v864 = vpack.c.b16 %v851, %v850
          %v865 = vpack.c.b16 %v853, %v852
          %v866 = vpack.c.b16 %v855, %v854
          %v867 = vpack.c.b16 %v857, %v856
          %v868 = vpack.c.b16 %v859, %v858
          %v869 = vpack.c.b16 %v861, %v860
          %878 = vmatpush.bf16.msra.mxu0 %v869
          %879 = vmatpush.bf16.msra.mxu0 %v868
          %880 = vmatpush.bf16.msra.mxu0 %v867
          %881 = vmatpush.bf16.msra.mxu0 %v866
          %882 = vmatpush.bf16.msra.mxu0 %v865
          %883 = vmatpush.bf16.msra.mxu0 %v864
          %884 = vmatpush.bf16.msra.mxu0 %v863
          %885 = vmatpush.bf16.msra.mxu0 %v862
          %886 = vmatmul.bf16.gmra.mxu0 %v802
          %v887 = vpop.f32.mrf.mxu0
          %v888 = vadd.f32 %v828, %v887
          %v889 = vpop.f32.mrf.mxu0
          %v890 = vadd.f32 %v828, %v889
          %891 = vmatmul.bf16.gmra.mxu0 %v803
          %v892 = vpop.f32.mrf.mxu0
          %v893 = vadd.f32 %v828, %v892
          %v894 = vpop.f32.mrf.mxu0
          %v895 = vadd.f32 %v828, %v894
          %896 = vmatmul.bf16.gmra.mxu0 %v804
          %v897 = vpop.f32.mrf.mxu0
          %v898 = vadd.f32 %v828, %v897
          %v899 = vpop.f32.mrf.mxu0
          %v900 = vadd.f32 %v828, %v899
          %901 = vmatmul.bf16.gmra.mxu0 %v805
          %v902 = vpop.f32.mrf.mxu0
          %v903 = vadd.f32 %v828, %v902
          %v904 = vpop.f32.mrf.mxu0
          %v905 = vadd.f32 %v828, %v904
          %906 = vmatmul.bf16.gmra.mxu0 %v806
          %v907 = vpop.f32.mrf.mxu0
          %v908 = vadd.f32 %v828, %v907
          %v909 = vpop.f32.mrf.mxu0
          %v910 = vadd.f32 %v828, %v909
          %911 = vmatmul.bf16.gmra.mxu0 %v807
          %v912 = vpop.f32.mrf.mxu0
          %v913 = vadd.f32 %v828, %v912
          %v914 = vpop.f32.mrf.mxu0
          %v915 = vadd.f32 %v828, %v914
          %916 = vmatmul.bf16.gmra.mxu0 %v808
          %v917 = vpop.f32.mrf.mxu0
          %v918 = vadd.f32 %v828, %v917
          %v919 = vpop.f32.mrf.mxu0
          %v920 = vadd.f32 %v828, %v919
          %921 = vmatmul.bf16.gmra.mxu0 %v809
          %v922 = vpop.f32.mrf.mxu0
          %v923 = vadd.f32 %v828, %v922
          %v924 = vpop.f32.mrf.mxu0
          %v925 = vadd.f32 %v828, %v924
          %926 = vdwg.mxu0
          %927 = vst [vmem:[%s394] sm:$0xff] %v888
          %928 = vst [vmem:[%s394 + $0x8] sm:$0xff] %v890
          %929 = vst [vmem:[%s394 + $0x10] sm:$0xff] %v893
          %930 = vst [vmem:[%s394 + $0x18] sm:$0xff] %v895
          %931 = vst [vmem:[%s394 + $0x20] sm:$0xff] %v898
          %932 = vst [vmem:[%s394 + $0x28] sm:$0xff] %v900
          %933 = vst [vmem:[%s394 + $0x30] sm:$0xff] %v903
          %934 = vst [vmem:[%s394 + $0x38] sm:$0xff] %v905
          %935 = vst [vmem:[%s394 + $0x40] sm:$0xff] %v908
          %936 = vst [vmem:[%s394 + $0x48] sm:$0xff] %v910
          %937 = vst [vmem:[%s394 + $0x50] sm:$0xff] %v913
          %938 = vst [vmem:[%s394 + $0x58] sm:$0xff] %v915
          %939 = vst [vmem:[%s394 + $0x60] sm:$0xff] %v918
          %940 = vst [vmem:[%s394 + $0x68] sm:$0xff] %v920
          %941 = vst [vmem:[%s394 + $0x70] sm:$0xff] %v923
          %942 = vst [vmem:[%s394 + $0x78] sm:$0xff] %v925
        $region93: #{gnn_forward.3} parent=80 // pred_fallthru
          _
        %s943 = smul.u32 16, %s21
        %p944 = scmp.lt.s32.totalorder %s943, 31
        %s945 = scalar_select %p944, %s943, 31
        %s946 = smul.addr %s945, 8
        %s947 = scalar_lea.vmem %s6, %s946
        // Predicated region
        $region94: #{gnn_forward.3} parent=80 // pred_check
          %p948 = pneg %p185
        $region95: #{gnn_forward.3} parent=80 // pred_check_branch
          %950 = sbr.rel (%p948) target = $region97
        $region96: #{gnn_forward.3} parent=80 // pred_region
          %s951 = smul.u32 16, %s21
        $region97: #{gnn_forward.3} parent=80 // pred_fallthru
          _
      $region81: #{gnn_forward.3} parent=5 // pred_fallthru
        _
      %p952 = scmp.le.s32.totalorder 2, %s12
      // Predicated region
      $region98: #{gnn_forward.3} parent=5 // pred_check
        %p953 = pneg %p952
      $region99: #{gnn_forward.3} parent=5 // pred_check_branch
        %955 = sbr.rel (%p953) target = $region101
      $region100: #{gnn_forward.3} parent=5 // pred_region
        %s956 = ssub.s32 %s12, 2
        // Predicated region
        $region102: #{gnn_forward.3} parent=100 // pred_check
          %p957 = pneg %p191
        $region103: #{gnn_forward.3} parent=100 // pred_check_branch
          %959 = sbr.rel (%p957) target = $region105
        $region104: #{gnn_forward.3} parent=100 // pred_region
          %s960 = smul.u32 16, %s23
          %p961 = scmp.lt.s32.totalorder %s960, 31
          %s962 = scalar_select %p961, %s960, 31
          %s963 = smul.addr %s962, 8
          %s964 = scalar_lea.vmem %s6, %s963
        $region105: #{gnn_forward.3} parent=100 // pred_fallthru
          _
      $region101: #{gnn_forward.3} parent=5 // pred_fallthru
        _
    $region6: #{gnn_forward.3} parent=1 // loop_footer
      %s16 = sadd.s32 1, %s12
    $region7: #{gnn_forward.3} parent=1 // loop_footer_branch
      %11 = sbr.rel target = $region3
    $region8: #{gnn_forward.3} parent=1 // loop_exit
      _

</llo_original>
